<compile_context>
chip_gen: v7x
topology: tpu7x:2x2x1
jax: 0.10.0
libtpu: 0.0.40
codegen_flags: <defaults>
</compile_context>

<pallas_src>
import functools
import math

import jax
import jax.numpy as jnp
from jax import lax
from jax.experimental import pallas as pl
from jax.experimental.pallas import tpu as pltpu


# ---------------------------------------------------------------------------
# Kernel
# ---------------------------------------------------------------------------
def _conv_in_lrelu_kernel(x_ref, bw_ref, bias_ref, o_ref, *, h, cout, eps,
                          neg_slope):
    """Fused 3x3 conv + InstanceNorm + LeakyReLU on lane-folded row blocks.

    x_ref   : (block_n*H, W*Cin)   activations, lane-folded, no spatial padding
    bw_ref  : (3, W*Cin, W*Cout)   banded conv weights (one band per kernel row;
                                   kw taps and W zero-padding folded in)
    bias_ref: (1, W*Cout)          conv bias repeated across the W lanes (f32)
    o_ref   : (block_n*H, W*Cout)  output
    """
    bh, _ = x_ref.shape
    wcout = o_ref.shape[-1]
    nb = bh // h                        # images in this block (static)
    w = wcout // cout
    inv_hw = 1.0 / float(h * w)

    x = x_ref[...]

    # --- conv: one banded MXU matmul per kernel row over the whole block ----
    y1 = jnp.dot(x, bw_ref[1], preferred_element_type=jnp.float32)
    y0 = jnp.dot(x, bw_ref[0], preferred_element_type=jnp.float32)
    y2 = jnp.dot(x, bw_ref[2], preferred_element_type=jnp.float32)

    # --- kh (row) halo in registers: sublane roll (XLU) + boundary masks ----
    # Output row r needs y0[r-1] (kh=0) and y2[r+1] (kh=2); rows on an image
    # boundary get zero instead (the conv's H-direction zero padding), which
    # also stops the halo leaking between the nb images sharing this block.
    row_in_img = lax.broadcasted_iota(jnp.int32, (bh, wcout), 0) % h
    not_first = row_in_img != 0
    not_last = row_in_img != (h - 1)
    acc = y1 + bias_ref[...]
    acc = acc + jnp.where(not_first, pltpu.roll(y0, shift=1, axis=0), 0.0)
    acc = acc + jnp.where(not_last, pltpu.roll(y2, shift=bh - 1, axis=0), 0.0)

    # --- InstanceNorm fold/broadcast matrices, generated in-kernel ----------
    # fold[l, c]  = 1 if lane l holds channel c   (lane layout: l = w*Cout + c)
    # foldt[c, l] = fold[l, c]                    (channel -> lane broadcast)
    # 0/1 matrices, so the f32 stat matmuls below are exact.
    lane_ch = lax.broadcasted_iota(jnp.int32, (wcout, cout), 0) % cout
    fold = (lane_ch == lax.broadcasted_iota(jnp.int32, (wcout, cout), 1)
            ).astype(jnp.float32)
    lane_ch_t = lax.broadcasted_iota(jnp.int32, (cout, wcout), 1) % cout
    foldt = (lane_ch_t == lax.broadcasted_iota(jnp.int32, (cout, wcout), 0)
             ).astype(jnp.float32)

    # --- per-image InstanceNorm2d (affine=False) + LeakyReLU -----------------
    # Two-pass (mean-centered) variance for numerical robustness.  nb is small
    # and static; everything below is cheap VPU work + tiny fold matmuls.
    for b in range(nb):
        a = acc[b * h:(b + 1) * h, :]                        # (H, W*Cout) f32
        s1 = jnp.sum(a, axis=0, keepdims=True)               # (1, W*Cout)
        mean_c = jnp.dot(s1, fold,
                         preferred_element_type=jnp.float32) * inv_hw
        mean_l = jnp.dot(mean_c, foldt,
                         preferred_element_type=jnp.float32)  # (1, W*Cout)
        centered = a - mean_l
        s2 = jnp.sum(centered * centered, axis=0, keepdims=True)
        var_c = jnp.dot(s2, fold,
                        preferred_element_type=jnp.float32) * inv_hw
        istd_l = jnp.dot(lax.rsqrt(var_c + eps), foldt,
                         preferred_element_type=jnp.float32)
        y = centered * istd_l
        y = jnp.where(y >= 0, y, neg_slope * y)               # LeakyReLU
        o_ref[pl.ds(b * h, h), :] = y.astype(o_ref.dtype)


# ---------------------------------------------------------------------------
# Host-side helpers (layout folding, parameter prep, tiling heuristics)
# ---------------------------------------------------------------------------
def _vmem_capacity_bytes():
    try:
        cap = getattr(pltpu.get_tpu_info(), "vmem_capacity_bytes", None)
        if cap:
            return int(cap)
    except Exception:
        pass
    return 64 * 1024 * 1024            # v7x per-core VMEM (smallest of v5e/v6e/v7x)


def _padded_cin(cin, width):
    """Smallest Cin' >= Cin making W*Cin' a multiple of 128 (full-lane x loads),
    capped so the zero padding costs at most ~2x."""
    step = 128 // math.gcd(width, 128)
    cin_p = ((cin + step - 1) // step) * step
    return cin_p if cin_p <= max(2 * cin, cin + 8) else cin


def _pick_block_n(n, h, per_image_bytes, const_bytes, budget, target_rows=256):
    """Images per grid step: grow the block until the MXU M dim (block_n*H)
    reaches ~target_rows or the VMEM budget is hit."""
    best = 1
    for d in range(1, n + 1):
        if n % d:
            continue
        if const_bytes + d * per_image_bytes > budget:
            break
        best = d
        if d * h >= target_rows:
            break
    return best


def prepare_conv_block_params(weight_oihw, bias, width,
                              compute_dtype=jnp.bfloat16):
    """Build the banded conv weight and lane-replicated bias ONCE per parameter
    set (do not rebuild per forward call).

    banded[i, w1*Cin + c, w2*Cout + co] = weight[co, c, i, w2 - w1 + 1],
    zero outside the 3 kw taps / outside 0 <= w1 < W, so each band folds both
    the kw taps and the W-direction zero padding into one matmul.
    """
    cout, cin, kh, kw = weight_oihw.shape
    assert kh == 3 and kw == 3, "ConvBlock uses 3x3 conv, pad=1"
    cin_p = _padded_cin(cin, width)
    # TODO(synk): per-kw-tap K=Cin matmul path for large Cin (banded weight
    # size/FLOPs scale with W^2 and stop paying off past Cin ~ 32).
    assert cin_p <= 32, "banded-weight formulation is intended for tiny Cin"

    w_t = jnp.transpose(weight_oihw, (2, 3, 1, 0)).astype(compute_dtype)
    if cin_p != cin:
        w_t = jnp.pad(w_t, ((0, 0), (0, 0), (0, cin_p - cin), (0, 0)))
    bands = []
    for i in range(3):
        bi = jnp.zeros((width * cin_p, width * cout), dtype=compute_dtype)
        for j in range(3):
            diag = jnp.eye(width, k=1 - j, dtype=compute_dtype)   # (W, W) band
            bi = bi + jnp.kron(diag, w_t[i, j])
        bands.append(bi)
    banded_w = jnp.stack(bands, axis=0)                   # (3, W*Cin', W*Cout)
    bias_lanes = jnp.tile(bias.astype(jnp.float32), width).reshape(
        1, width * cout)
    return banded_w, bias_lanes, cin_p


def fold_input(x_nchw, cin_p):
    """NCHW -> lane-folded (N*H, W*Cin') with zero channel padding.
    TODO(synk): keep this layout across chained ConvBlocks (it is the kernel's
    native in/out layout); the transpose here is only for NCHW callers."""
    n, cin, h, w = x_nchw.shape
    x = jnp.transpose(x_nchw, (0, 2, 3, 1))
    if cin_p != cin:
        x = jnp.pad(x, ((0, 0), (0, 0), (0, 0), (0, cin_p - cin)))
    return x.reshape(n * h, w * cin_p)


def unfold_output(y_fold, n, h, w, cout):
    """Lane-folded (N*H, W*Cout) -> NCHW."""
    return jnp.transpose(y_fold.reshape(n, h, w, cout), (0, 3, 1, 2))


# ---------------------------------------------------------------------------
# pallas_call wrappers
# ---------------------------------------------------------------------------
def conv_block_folded(x_fold, banded_w, bias_lanes, *, n, h, cout,
                      eps=1e-5, neg_slope=0.01, out_dtype=None, block_n=None):
    """ConvBlock forward on the lane-folded layout.

    x_fold: (N*H, W*Cin'), banded_w: (3, W*Cin', W*Cout), bias_lanes: (1, W*Cout).
    Returns (N*H, W*Cout) in `out_dtype` (default: x_fold.dtype, e.g. bf16 so
    chained decoder blocks keep a half-width HBM footprint).
    """
    nh, wcin = x_fold.shape
    assert nh == n * h and h >= 1
    kh, wcin_b, wcout = banded_w.shape
    assert kh == 3 and wcin_b == wcin and wcout % cout == 0
    if out_dtype is None:
        out_dtype = x_fold.dtype

    # VMEM budgeting from the actual resident set (v7x has only 64 MiB).
    cap = _vmem_capacity_bytes()
    const_bytes = 2 * (banded_w.size * banded_w.dtype.itemsize + wcout * 4)
    per_image = h * (2 * wcin * x_fold.dtype.itemsize            # x block (2 bufs)
                     + 2 * wcout * jnp.dtype(out_dtype).itemsize  # out block (2 bufs)
                     + 6 * wcout * 4)                             # f32 live values
    if block_n is None:
        block_n = _pick_block_n(n, h, per_image, const_bytes, cap // 2)
    assert n % block_n == 0
    vmem_limit = int(min(cap * 3 // 4,
                         max(32 * 1024 * 1024,
                             2 * (const_bytes + block_n * per_image))))

    bh = block_n * h
    kernel = functools.partial(_conv_in_lrelu_kernel, h=h, cout=cout,
                               eps=float(eps), neg_slope=float(neg_slope))
    return pl.pallas_call(
        kernel,
        out_shape=jax.ShapeDtypeStruct((nh, wcout), out_dtype),
        grid_spec=pltpu.PrefetchScalarGridSpec(
            num_scalar_prefetch=0,
            grid=(n // block_n,),
            in_specs=[
                pl.BlockSpec((bh, wcin), lambda i: (i, 0)),
                # Grid-invariant operands (constant index_map): re-fetch is
                # elided by the pipeline; see TODO(synk) re Buffered(1).
                pl.BlockSpec((3, wcin, wcout), lambda i: (0, 0, 0)),
                pl.BlockSpec((1, wcout), lambda i: (0, 0)),
            ],
            out_specs=pl.BlockSpec((bh, wcout), lambda i: (i, 0)),
        ),
        compiler_params=pltpu.CompilerParams(
            dimension_semantics=("parallel",),
            vmem_limit_bytes=vmem_limit,
        ),
    )(x_fold, banded_w, bias_lanes)


def conv_block(x_nchw, weight_oihw, bias, *, eps=1e-5, neg_slope=0.01,
               out_dtype=None, block_n=None):
    """NCHW convenience wrapper: Conv2d(3x3, pad=1) -> InstanceNorm2d -> LeakyReLU."""
    n, cin, h, w = x_nchw.shape
    cout = weight_oihw.shape[0]
    banded_w, bias_lanes, cin_p = prepare_conv_block_params(
        weight_oihw, bias, w, compute_dtype=x_nchw.dtype)
    x_fold = fold_input(x_nchw, cin_p)
    y_fold = conv_block_folded(x_fold, banded_w, bias_lanes, n=n, h=h,
                               cout=cout, eps=eps, neg_slope=neg_slope,
                               out_dtype=out_dtype, block_n=block_n)
    return unfold_output(y_fold, n, h, w, cout)


# ---------------------------------------------------------------------------
# Reference + demo
# ---------------------------------------------------------------------------
def _reference(x_nchw, weight, bias, eps=1e-5, neg_slope=0.01):
    """Pure-JAX reference (f32, NCHW) for the same forward pass."""
    x = x_nchw.astype(jnp.float32)
    w = weight.astype(jnp.float32)
    y = lax.conv_general_dilated(
        x, w, window_strides=(1, 1), padding=((1, 1), (1, 1)),
        dimension_numbers=("NCHW", "OIHW", "NCHW"),
    ) + bias.astype(jnp.float32).reshape(1, -1, 1, 1)
    mean = jnp.mean(y, axis=(2, 3), keepdims=True)
    var = jnp.mean((y - mean) ** 2, axis=(2, 3), keepdims=True)
    y = (y - mean) * lax.rsqrt(var + eps)
    return jnp.where(y >= 0, y, neg_slope * y)


if __name__ == "__main__":
    N, Cin, Cout, H, W, K = 2, 4, 8, 16, 16, 3

    key = jax.random.PRNGKey(0)
    kx, kw_, kb = jax.random.split(key, 3)
    x32 = jax.random.normal(kx, (N, Cin, H, W), dtype=jnp.float32)
    w32 = jax.random.normal(kw_, (Cout, Cin, K, K),
                            dtype=jnp.float32) / jnp.sqrt(Cin * K * K)
    b32 = jax.random.normal(kb, (Cout,), dtype=jnp.float32) * 0.1

    # bf16 activations / weights into the kernel (f32 accumulation inside).
    x = x32.astype(jnp.bfloat16)
    w = w32.astype(jnp.bfloat16)

    # Path 1: lane-folded API — params prepared once per parameter set, folded
    # layout kept, bf16 output (what a chained decoder block would consume).
    banded_w, bias_lanes, cin_p = prepare_conv_block_params(w, b32, W)
    x_fold = fold_input(x, cin_p)
    run_folded = jax.jit(functools.partial(conv_block_folded,
                                           n=N, h=H, cout=Cout))
    y_fold = jax.block_until_ready(run_folded(x_fold, banded_w, bias_lanes))
    out_bf16 = unfold_output(y_fold, N, H, W, Cout)

    # Path 2: NCHW convenience wrapper with f32 output for a tight check.
    run_nchw = jax.jit(functools.partial(conv_block, out_dtype=jnp.float32))
    out_f32 = jax.block_until_ready(run_nchw(x, w, b32))

    ref = _reference(x, w, b32)
    assert out_f32.shape == (N, Cout, H, W) and out_f32.dtype == jnp.float32
    assert out_bf16.shape == (N, Cout, H, W) and out_bf16.dtype == jnp.bfloat16
    assert jnp.allclose(out_f32, ref, rtol=2e-3, atol=2e-3), \
        "f32 path mismatch vs reference"
    assert jnp.allclose(out_bf16.astype(jnp.float32), ref,
                        rtol=3e-2, atol=3e-2), "bf16 path mismatch vs reference"

    print("KERNEL_OK")
</pallas_src>

<mosaic_0001>
module attributes {stable_mosaic.version = 11 : i64} {
  func.func @_conv_in_lrelu_kernel(%arg0: i32, %arg1: memref<32x128xbf16, #tpu.memory_space<vmem>>, %arg2: memref<3x128x128xbf16, #tpu.memory_space<vmem>>, %arg3: memref<1x128xf32, #tpu.memory_space<vmem>>, %arg4: memref<32x128xbf16, #tpu.memory_space<vmem>>) attributes {dimension_semantics = [#tpu.dimension_semantics<parallel>], iteration_bounds = array<i64: 1>, scalar_prefetch = 0 : i64, scratch_operands = 0 : i64, tpu.core_type = #tpu.core_type<tc>, window_params = [{transform_indices = @transform_0, window_bounds = array<i64: 32, 128>}, {pipeline_mode = #tpu.pipeline_mode<synchronous>, transform_indices = @transform_1, window_bounds = array<i64: 3, 128, 128>}, {pipeline_mode = #tpu.pipeline_mode<synchronous>, transform_indices = @transform_2, window_bounds = array<i64: 1, 128>}, {transform_indices = @transform_3, window_bounds = array<i64: 32, 128>}]} {
    %c0 = arith.constant 0 : index
    %c0_0 = arith.constant 0 : index
    %0 = vector.load %arg1[%c0, %c0_0] : memref<32x128xbf16, #tpu.memory_space<vmem>>, vector<32x128xbf16>
    %c1 = arith.constant 1 : index
    %c0_1 = arith.constant 0 : index
    %c0_2 = arith.constant 0 : index
    %1 = vector.load %arg2[%c1, %c0_1, %c0_2] : memref<3x128x128xbf16, #tpu.memory_space<vmem>>, vector<1x128x128xbf16>
    %2 = vector.shape_cast %1 : vector<1x128x128xbf16> to vector<128x128xbf16>
    %cst = arith.constant dense<0.000000e+00> : vector<32x128xf32>
    %3 = tpu.matmul %0, %2, %cst {dimension_numbers = #tpu.dot_dimension_numbers<[1], [0], [0], [1], [0, 0, 1, 1], [], []>} : vector<32x128xbf16>, vector<128x128xbf16>, vector<32x128xf32> -> vector<32x128xf32>
    %c0_3 = arith.constant 0 : index
    %c0_4 = arith.constant 0 : index
    %c0_5 = arith.constant 0 : index
    %4 = vector.load %arg2[%c0_3, %c0_4, %c0_5] : memref<3x128x128xbf16, #tpu.memory_space<vmem>>, vector<1x128x128xbf16>
    %5 = vector.shape_cast %4 : vector<1x128x128xbf16> to vector<128x128xbf16>
    %cst_6 = arith.constant dense<0.000000e+00> : vector<32x128xf32>
    %6 = tpu.matmul %0, %5, %cst_6 {dimension_numbers = #tpu.dot_dimension_numbers<[1], [0], [0], [1], [0, 0, 1, 1], [], []>} : vector<32x128xbf16>, vector<128x128xbf16>, vector<32x128xf32> -> vector<32x128xf32>
    %c2 = arith.constant 2 : index
    %c0_7 = arith.constant 0 : index
    %c0_8 = arith.constant 0 : index
    %7 = vector.load %arg2[%c2, %c0_7, %c0_8] : memref<3x128x128xbf16, #tpu.memory_space<vmem>>, vector<1x128x128xbf16>
    %8 = vector.shape_cast %7 : vector<1x128x128xbf16> to vector<128x128xbf16>
    %cst_9 = arith.constant dense<0.000000e+00> : vector<32x128xf32>
    %9 = tpu.matmul %0, %8, %cst_9 {dimension_numbers = #tpu.dot_dimension_numbers<[1], [0], [0], [1], [0, 0, 1, 1], [], []>} : vector<32x128xbf16>, vector<128x128xbf16>, vector<32x128xf32> -> vector<32x128xf32>
    %10 = tpu.iota {dimensions = array<i32: 0>} : vector<32x128xi32>
    %c16_i32 = arith.constant 16 : i32
    %c0_i32 = arith.constant 0 : i32
    %11 = arith.cmpi eq, %c16_i32, %c0_i32 : i32
    %c1_i32 = arith.constant 1 : i32
    %12 = arith.select %11, %c1_i32, %c16_i32 : i32
    %13 = vector.broadcast %12 : i32 to vector<32x128xi32>
    %14 = arith.remsi %10, %13 : vector<32x128xi32>
    %c0_i32_10 = arith.constant 0 : i32
    %15 = vector.broadcast %c0_i32_10 : i32 to vector<32x128xi32>
    %16 = arith.cmpi ne, %14, %15 : vector<32x128xi32>
    %c0_i32_11 = arith.constant 0 : i32
    %17 = vector.broadcast %c0_i32_11 : i32 to vector<32x128xi32>
    %18 = arith.cmpi slt, %14, %17 : vector<32x128xi32>
    %c0_i32_12 = arith.constant 0 : i32
    %19 = arith.cmpi slt, %12, %c0_i32_12 : i32
    %20 = vector.broadcast %19 : i1 to vector<32x128xi1>
    %21 = vector.broadcast %20 : vector<32x128xi1> to vector<32x128xi1>
    %22 = arith.xori %18, %21 : vector<32x128xi1>
    %23 = arith.andi %22, %16 : vector<32x128xi1>
    %24 = vector.broadcast %12 : i32 to vector<32x128xi32>
    %25 = arith.addi %14, %24 : vector<32x128xi32>
    %26 = arith.select %23, %25, %14 : vector<32x128xi1>, vector<32x128xi32>
    %c0_i32_13 = arith.constant 0 : i32
    %27 = vector.broadcast %c0_i32_13 : i32 to vector<32x128xi32>
    %28 = arith.cmpi ne, %26, %27 : vector<32x128xi32>
    %c15_i32 = arith.constant 15 : i32
    %29 = vector.broadcast %c15_i32 : i32 to vector<32x128xi32>
    %30 = arith.cmpi ne, %26, %29 : vector<32x128xi32>
    %c0_14 = arith.constant 0 : index
    %c0_15 = arith.constant 0 : index
    %31 = vector.load %arg3[%c0_14, %c0_15] : memref<1x128xf32, #tpu.memory_space<vmem>>, vector<1x128xf32>
    %32 = vector.broadcast %31 : vector<1x128xf32> to vector<32x128xf32>
    %33 = arith.addf %3, %32 : vector<32x128xf32>
    %c1_i32_16 = arith.constant 1 : i32
    %34 = tpu.dynamic_rotate %6 by %c1_i32_16 dim 0 : vector<32x128xf32>, i32 -> vector<32x128xf32>
    %cst_17 = arith.constant 0.000000e+00 : f32
    %35 = vector.broadcast %cst_17 : f32 to vector<32x128xf32>
    %36 = arith.select %28, %34, %35 : vector<32x128xi1>, vector<32x128xf32>
    %37 = arith.addf %33, %36 : vector<32x128xf32>
    %c31_i32 = arith.constant 31 : i32
    %38 = tpu.dynamic_rotate %9 by %c31_i32 dim 0 : vector<32x128xf32>, i32 -> vector<32x128xf32>
    %cst_18 = arith.constant 0.000000e+00 : f32
    %39 = vector.broadcast %cst_18 : f32 to vector<32x128xf32>
    %40 = arith.select %30, %38, %39 : vector<32x128xi1>, vector<32x128xf32>
    %41 = arith.addf %37, %40 : vector<32x128xf32>
    %42 = tpu.iota {dimensions = array<i32: 0>} : vector<128x8xi32>
    %c8_i32 = arith.constant 8 : i32
    %c0_i32_19 = arith.constant 0 : i32
    %43 = arith.cmpi eq, %c8_i32, %c0_i32_19 : i32
    %c1_i32_20 = arith.constant 1 : i32
    %44 = arith.select %43, %c1_i32_20, %c8_i32 : i32
    %45 = vector.broadcast %44 : i32 to vector<128x8xi32>
    %46 = arith.remsi %42, %45 : vector<128x8xi32>
    %c0_i32_21 = arith.constant 0 : i32
    %47 = vector.broadcast %c0_i32_21 : i32 to vector<128x8xi32>
    %48 = arith.cmpi ne, %46, %47 : vector<128x8xi32>
    %c0_i32_22 = arith.constant 0 : i32
    %49 = vector.broadcast %c0_i32_22 : i32 to vector<128x8xi32>
    %50 = arith.cmpi slt, %46, %49 : vector<128x8xi32>
    %c0_i32_23 = arith.constant 0 : i32
    %51 = arith.cmpi slt, %44, %c0_i32_23 : i32
    %52 = vector.broadcast %51 : i1 to vector<128x8xi1>
    %53 = vector.broadcast %52 : vector<128x8xi1> to vector<128x8xi1>
    %54 = arith.xori %50, %53 : vector<128x8xi1>
    %55 = arith.andi %54, %48 : vector<128x8xi1>
    %56 = vector.broadcast %44 : i32 to vector<128x8xi32>
    %57 = arith.addi %46, %56 : vector<128x8xi32>
    %58 = arith.select %55, %57, %46 : vector<128x8xi1>, vector<128x8xi32>
    %59 = tpu.iota {dimensions = array<i32: 1>} : vector<128x8xi32>
    %60 = arith.cmpi eq, %58, %59 : vector<128x8xi32>
    %61 = arith.extui %60 : vector<128x8xi1> to vector<128x8xi32>
    %62 = arith.sitofp %61 : vector<128x8xi32> to vector<128x8xf32>
    %63 = tpu.iota {dimensions = array<i32: 1>} : vector<8x128xi32>
    %c8_i32_24 = arith.constant 8 : i32
    %c0_i32_25 = arith.constant 0 : i32
    %64 = arith.cmpi eq, %c8_i32_24, %c0_i32_25 : i32
    %c1_i32_26 = arith.constant 1 : i32
    %65 = arith.select %64, %c1_i32_26, %c8_i32_24 : i32
    %66 = vector.broadcast %65 : i32 to vector<8x128xi32>
    %67 = arith.remsi %63, %66 : vector<8x128xi32>
    %c0_i32_27 = arith.constant 0 : i32
    %68 = vector.broadcast %c0_i32_27 : i32 to vector<8x128xi32>
    %69 = arith.cmpi ne, %67, %68 : vector<8x128xi32>
    %c0_i32_28 = arith.constant 0 : i32
    %70 = vector.broadcast %c0_i32_28 : i32 to vector<8x128xi32>
    %71 = arith.cmpi slt, %67, %70 : vector<8x128xi32>
    %c0_i32_29 = arith.constant 0 : i32
    %72 = arith.cmpi slt, %65, %c0_i32_29 : i32
    %73 = vector.broadcast %72 : i1 to vector<8x128xi1>
    %74 = vector.broadcast %73 : vector<8x128xi1> to vector<8x128xi1>
    %75 = arith.xori %71, %74 : vector<8x128xi1>
    %76 = arith.andi %75, %69 : vector<8x128xi1>
    %77 = vector.broadcast %65 : i32 to vector<8x128xi32>
    %78 = arith.addi %67, %77 : vector<8x128xi32>
    %79 = arith.select %76, %78, %67 : vector<8x128xi1>, vector<8x128xi32>
    %80 = tpu.iota {dimensions = array<i32: 0>} : vector<8x128xi32>
    %81 = arith.cmpi eq, %79, %80 : vector<8x128xi32>
    %82 = arith.extui %81 : vector<8x128xi1> to vector<8x128xi32>
    %83 = arith.sitofp %82 : vector<8x128xi32> to vector<8x128xf32>
    %84 = vector.extract_strided_slice %41 {offsets = [0, 0], sizes = [16, 128], strides = [1, 1]} : vector<32x128xf32> to vector<16x128xf32>
    %cst_30 = arith.constant dense<0.000000e+00> : vector<128xf32>
    %85 = vector.multi_reduction <add>, %84, %cst_30 [0] : vector<16x128xf32> to vector<128xf32>
    %86 = vector.shape_cast %85 : vector<128xf32> to vector<1x128xf32>
    %cst_31 = arith.constant dense<0.000000e+00> : vector<1x8xf32>
    %87 = tpu.matmul %86, %62, %cst_31 {dimension_numbers = #tpu.dot_dimension_numbers<[1], [0], [0], [1], [0, 0, 1, 1], [], []>} : vector<1x128xf32>, vector<128x8xf32>, vector<1x8xf32> -> vector<1x8xf32>
    %cst_32 = arith.constant 3.906250e-03 : f32
    %88 = vector.broadcast %cst_32 : f32 to vector<1x8xf32>
    %89 = arith.mulf %87, %88 : vector<1x8xf32>
    %cst_33 = arith.constant dense<0.000000e+00> : vector<1x128xf32>
    %90 = tpu.matmul %89, %83, %cst_33 {dimension_numbers = #tpu.dot_dimension_numbers<[1], [0], [0], [1], [0, 0, 1, 1], [], []>} : vector<1x8xf32>, vector<8x128xf32>, vector<1x128xf32> -> vector<1x128xf32>
    %91 = vector.broadcast %90 : vector<1x128xf32> to vector<16x128xf32>
    %92 = arith.subf %84, %91 : vector<16x128xf32>
    %93 = arith.mulf %92, %92 : vector<16x128xf32>
    %cst_34 = arith.constant dense<0.000000e+00> : vector<128xf32>
    %94 = vector.multi_reduction <add>, %93, %cst_34 [0] : vector<16x128xf32> to vector<128xf32>
    %95 = vector.shape_cast %94 : vector<128xf32> to vector<1x128xf32>
    %cst_35 = arith.constant dense<0.000000e+00> : vector<1x8xf32>
    %96 = tpu.matmul %95, %62, %cst_35 {dimension_numbers = #tpu.dot_dimension_numbers<[1], [0], [0], [1], [0, 0, 1, 1], [], []>} : vector<1x128xf32>, vector<128x8xf32>, vector<1x8xf32> -> vector<1x8xf32>
    %cst_36 = arith.constant 3.906250e-03 : f32
    %97 = vector.broadcast %cst_36 : f32 to vector<1x8xf32>
    %98 = arith.mulf %96, %97 : vector<1x8xf32>
    %cst_37 = arith.constant 9.99999974E-6 : f32
    %99 = vector.broadcast %cst_37 : f32 to vector<1x8xf32>
    %100 = arith.addf %98, %99 : vector<1x8xf32>
    %101 = math.rsqrt %100 : vector<1x8xf32>
    %cst_38 = arith.constant dense<0.000000e+00> : vector<1x128xf32>
    %102 = tpu.matmul %101, %83, %cst_38 {dimension_numbers = #tpu.dot_dimension_numbers<[1], [0], [0], [1], [0, 0, 1, 1], [], []>} : vector<1x8xf32>, vector<8x128xf32>, vector<1x128xf32> -> vector<1x128xf32>
    %103 = vector.broadcast %102 : vector<1x128xf32> to vector<16x128xf32>
    %104 = arith.mulf %92, %103 : vector<16x128xf32>
    %cst_39 = arith.constant 0.000000e+00 : f32
    %105 = vector.broadcast %cst_39 : f32 to vector<16x128xf32>
    %106 = arith.cmpf oge, %104, %105 : vector<16x128xf32>
    %cst_40 = arith.constant 0.00999999977 : f32
    %107 = vector.broadcast %cst_40 : f32 to vector<16x128xf32>
    %108 = arith.mulf %107, %104 : vector<16x128xf32>
    %109 = arith.select %106, %104, %108 : vector<16x128xi1>, vector<16x128xf32>
    %110 = arith.truncf %109 : vector<16x128xf32> to vector<16x128xbf16>
    %c0_41 = arith.constant 0 : index
    %c0_42 = arith.constant 0 : index
    %111 = vector.load %arg4[%c0_41, %c0_42] : memref<32x128xbf16, #tpu.memory_space<vmem>>, vector<16x128xbf16>
    tpu.vector_store %arg4[%c0_41, %c0_42], %110 {strides = array<i32>} : memref<32x128xbf16, #tpu.memory_space<vmem>>, vector<16x128xbf16>,
    %112 = vector.extract_strided_slice %41 {offsets = [16, 0], sizes = [16, 128], strides = [1, 1]} : vector<32x128xf32> to vector<16x128xf32>
    %cst_43 = arith.constant dense<0.000000e+00> : vector<128xf32>
    %113 = vector.multi_reduction <add>, %112, %cst_43 [0] : vector<16x128xf32> to vector<128xf32>
    %114 = vector.shape_cast %113 : vector<128xf32> to vector<1x128xf32>
    %cst_44 = arith.constant dense<0.000000e+00> : vector<1x8xf32>
    %115 = tpu.matmul %114, %62, %cst_44 {dimension_numbers = #tpu.dot_dimension_numbers<[1], [0], [0], [1], [0, 0, 1, 1], [], []>} : vector<1x128xf32>, vector<128x8xf32>, vector<1x8xf32> -> vector<1x8xf32>
    %cst_45 = arith.constant 3.906250e-03 : f32
    %116 = vector.broadcast %cst_45 : f32 to vector<1x8xf32>
    %117 = arith.mulf %115, %116 : vector<1x8xf32>
    %cst_46 = arith.constant dense<0.000000e+00> : vector<1x128xf32>
    %118 = tpu.matmul %117, %83, %cst_46 {dimension_numbers = #tpu.dot_dimension_numbers<[1], [0], [0], [1], [0, 0, 1, 1], [], []>} : vector<1x8xf32>, vector<8x128xf32>, vector<1x128xf32> -> vector<1x128xf32>
    %119 = vector.broadcast %118 : vector<1x128xf32> to vector<16x128xf32>
    %120 = arith.subf %112, %119 : vector<16x128xf32>
    %121 = arith.mulf %120, %120 : vector<16x128xf32>
    %cst_47 = arith.constant dense<0.000000e+00> : vector<128xf32>
    %122 = vector.multi_reduction <add>, %121, %cst_47 [0] : vector<16x128xf32> to vector<128xf32>
    %123 = vector.shape_cast %122 : vector<128xf32> to vector<1x128xf32>
    %cst_48 = arith.constant dense<0.000000e+00> : vector<1x8xf32>
    %124 = tpu.matmul %123, %62, %cst_48 {dimension_numbers = #tpu.dot_dimension_numbers<[1], [0], [0], [1], [0, 0, 1, 1], [], []>} : vector<1x128xf32>, vector<128x8xf32>, vector<1x8xf32> -> vector<1x8xf32>
    %cst_49 = arith.constant 3.906250e-03 : f32
    %125 = vector.broadcast %cst_49 : f32 to vector<1x8xf32>
    %126 = arith.mulf %124, %125 : vector<1x8xf32>
    %cst_50 = arith.constant 9.99999974E-6 : f32
    %127 = vector.broadcast %cst_50 : f32 to vector<1x8xf32>
    %128 = arith.addf %126, %127 : vector<1x8xf32>
    %129 = math.rsqrt %128 : vector<1x8xf32>
    %cst_51 = arith.constant dense<0.000000e+00> : vector<1x128xf32>
    %130 = tpu.matmul %129, %83, %cst_51 {dimension_numbers = #tpu.dot_dimension_numbers<[1], [0], [0], [1], [0, 0, 1, 1], [], []>} : vector<1x8xf32>, vector<8x128xf32>, vector<1x128xf32> -> vector<1x128xf32>
    %131 = vector.broadcast %130 : vector<1x128xf32> to vector<16x128xf32>
    %132 = arith.mulf %120, %131 : vector<16x128xf32>
    %cst_52 = arith.constant 0.000000e+00 : f32
    %133 = vector.broadcast %cst_52 : f32 to vector<16x128xf32>
    %134 = arith.cmpf oge, %132, %133 : vector<16x128xf32>
    %cst_53 = arith.constant 0.00999999977 : f32
    %135 = vector.broadcast %cst_53 : f32 to vector<16x128xf32>
    %136 = arith.mulf %135, %132 : vector<16x128xf32>
    %137 = arith.select %134, %132, %136 : vector<16x128xi1>, vector<16x128xf32>
    %138 = arith.truncf %137 : vector<16x128xf32> to vector<16x128xbf16>
    %c16 = arith.constant 16 : index
    %c0_54 = arith.constant 0 : index
    %139 = vector.load %arg4[%c16, %c0_54] : memref<32x128xbf16, #tpu.memory_space<vmem>>, vector<16x128xbf16>
    tpu.vector_store %arg4[%c16, %c0_54], %138 {strides = array<i32>} : memref<32x128xbf16, #tpu.memory_space<vmem>>, vector<16x128xbf16>,
    return
  }
  func.func @transform_0(%arg0: i32) -> (i32, i32) {
    %c0_i32 = arith.constant 0 : i32
    %c0_i32_0 = arith.constant 0 : i32
    return %arg0, %c0_i32 : i32, i32
  }
  func.func @transform_1(%arg0: i32) -> (i32, i32, i32) {
    %c0_i32 = arith.constant 0 : i32
    %c0_i32_0 = arith.constant 0 : i32
    %c0_i32_1 = arith.constant 0 : i32
    %c0_i32_2 = arith.constant 0 : i32
    return %c0_i32, %c0_i32_0, %c0_i32_1 : i32, i32, i32
  }
  func.func @transform_2(%arg0: i32) -> (i32, i32) {
    %c0_i32 = arith.constant 0 : i32
    %c0_i32_0 = arith.constant 0 : i32
    %c0_i32_1 = arith.constant 0 : i32
    return %c0_i32, %c0_i32_0 : i32, i32
  }
  func.func @transform_3(%arg0: i32) -> (i32, i32) {
    %c0_i32 = arith.constant 0 : i32
    %c0_i32_0 = arith.constant 0 : i32
    return %arg0, %c0_i32 : i32, i32
  }
}

</mosaic_0001>

<llo_original>
// kernel: conv_block_folded.1
$region0: #{conv_block_folded.1}
  #allocation0 [shape = 'u32[]', space=smem, size = 0x4, offset = 0x4, fixed_abs, tag = 'smem constant byte address 0x4 - core index']
  #allocation1 [shape = 'u32[144,128]{1,0:T(1,128)}', space=vmem, size = 0x12000, scoped, tag = 'internal scratch']
  %s0 = inlined_call_operand.hbm [shape: bf16[32,128], index: 0, kind: input, shape index: {}]
  %s1 = inlined_call_operand.hbm [shape: bf16[3,128,128], index: 1, kind: input, shape index: {}]
  %s2 = inlined_call_operand.vmem [shape: f32[1,128], index: 2, kind: input, shape index: {}]
  %s3 = inlined_call_operand.hbm [shape: bf16[32,128], index: 3, kind: output, shape index: {}]
  %s4 = sld [smem:[#allocation0]]
  $region30: #{conv_block_folded.1} parent=0
    _
  %s6 = ssub.s32 1, %s4
  %s7 = scalar_select 0, %s6, %s4
  $region1: #{conv_block_folded.1} parent=0
    #allocation2 [shape = 'u8[8192]{0}', space=vmem, size = 0x2000, scoped, tag = 'input window, operand 0, single buffered']
    #allocation3 [shape = 's32[1]{0}', space=sflag, size = 0x4, scoped, tag = 'scoped memory for conv_block_folded.1']
    #allocation4 [shape = 's32[1]{0}', space=sflag, size = 0x4, scoped, tag = 'scoped memory for conv_block_folded.1']
    #allocation5 [shape = 'u8[98304]{0}', space=vmem, size = 0x18000, scoped, tag = 'input window, operand 1, single buffered']
    #allocation6 [shape = 's32[1]{0}', space=sflag, size = 0x4, scoped, tag = 'scoped memory for conv_block_folded.1']
    #allocation7 [shape = 'u8[8192]{0}', space=vmem, size = 0x2000, scoped, tag = 'output window, operand 0, single buffered']
    %8 = vsyncpa [#allocation3], 0
    %9 = vsyncpa [#allocation6], 0
    %10 = vsyncpa [#allocation4], 0
    // Predicated region
    $region2: #{conv_block_folded.1} parent=1 // pred_check
      _
    $region3: #{conv_block_folded.1} parent=1 // pred_check_branch
      %12 = sbr.rel (0) target = $region5
    $region4: #{conv_block_folded.1} parent=1 // pred_region
      %s14 = ssub.s32 256, 256
      %15 = vsyncadd [#allocation3], %s14
      %s16 = sshll.u32 [#allocation2], 4
      %s17 = int_to_ptr.vmem [resolvable:$true] %s16
      %22 = dma.hbm_to_vmem [thread:$0]  %s0, 256, %s17, [#allocation3], 64, 64, 4
    $region5: #{conv_block_folded.1} parent=1 // pred_fallthru
      _
    // Predicated region
    $region6: #{conv_block_folded.1} parent=1 // pred_check
      _
    $region7: #{conv_block_folded.1} parent=1 // pred_check_branch
      %24 = sbr.rel (0) target = $region9
    $region8: #{conv_block_folded.1} parent=1 // pred_region
      %s26 = ssub.s32 3072, 3072
      %27 = vsyncadd [#allocation6], %s26
      %s28 = sshll.u32 [#allocation5], 4
      %s29 = int_to_ptr.vmem [resolvable:$true] %s28
      %34 = dma.hbm_to_vmem [thread:$0]  %s1, 3072, %s29, [#allocation6], 64, 64, 4
    $region9: #{conv_block_folded.1} parent=1 // pred_fallthru
      _
    // Predicated region
    $region10: #{conv_block_folded.1} parent=1 // pred_check
      _
    $region11: #{conv_block_folded.1} parent=1 // pred_check_branch
      %36 = sbr.rel (0) target = $region13
    $region12: #{conv_block_folded.1} parent=1 // pred_region
      _
    $region13: #{conv_block_folded.1} parent=1 // pred_fallthru
      _
    // Predicated region
    $region14: #{conv_block_folded.1} parent=1 // pred_check
      _
    $region15: #{conv_block_folded.1} parent=1 // pred_check_branch
      %38 = sbr.rel (0) target = $region17
    $region16: #{conv_block_folded.1} parent=1 // pred_region
      %39 = dma.done [#allocation3], 256
    $region17: #{conv_block_folded.1} parent=1 // pred_fallthru
      _
    // Predicated region
    $region18: #{conv_block_folded.1} parent=1 // pred_check
      _
    $region19: #{conv_block_folded.1} parent=1 // pred_check_branch
      %41 = sbr.rel (0) target = $region21
    $region20: #{conv_block_folded.1} parent=1 // pred_region
      %42 = dma.done [#allocation6], 3072
    $region21: #{conv_block_folded.1} parent=1 // pred_fallthru
      _
    %v44 = vld [vmem:[#allocation2] sm:$0xf]
    %v45 = vld [vmem:[#allocation2 + $0x4] sm:$0xf]
    %v46 = vld [vmem:[#allocation2 + $0x8] sm:$0xf]
    %v47 = vld [vmem:[#allocation2 + $0xc] sm:$0xf]
    %s48 = scalar_lea.vmem [#allocation5], 64
    %v49 = vld [vmem:[%s48] sm:$0xf]
    %v50 = vld [vmem:[%s48 + $0x4] sm:$0xf]
    %v51 = vld [vmem:[%s48 + $0x8] sm:$0xf]
    %v52 = vld [vmem:[%s48 + $0xc] sm:$0xf]
    %v53 = vld [vmem:[%s48 + $0x10] sm:$0xf]
    %v54 = vld [vmem:[%s48 + $0x14] sm:$0xf]
    %v55 = vld [vmem:[%s48 + $0x18] sm:$0xf]
    %v56 = vld [vmem:[%s48 + $0x1c] sm:$0xf]
    %v57 = vld [vmem:[%s48 + $0x20] sm:$0xf]
    %v58 = vld [vmem:[%s48 + $0x24] sm:$0xf]
    %v59 = vld [vmem:[%s48 + $0x28] sm:$0xf]
    %v60 = vld [vmem:[%s48 + $0x2c] sm:$0xf]
    %v61 = vld [vmem:[%s48 + $0x30] sm:$0xf]
    %v62 = vld [vmem:[%s48 + $0x34] sm:$0xf]
    %v63 = vld [vmem:[%s48 + $0x38] sm:$0xf]
    %v64 = vld [vmem:[%s48 + $0x3c] sm:$0xf]
    %v65 = vld [vmem:[#allocation5] sm:$0xf]
    %v66 = vld [vmem:[#allocation5 + $0x4] sm:$0xf]
    %v67 = vld [vmem:[#allocation5 + $0x8] sm:$0xf]
    %v68 = vld [vmem:[#allocation5 + $0xc] sm:$0xf]
    %v69 = vld [vmem:[#allocation5 + $0x10] sm:$0xf]
    %v70 = vld [vmem:[#allocation5 + $0x14] sm:$0xf]
    %v71 = vld [vmem:[#allocation5 + $0x18] sm:$0xf]
    %v72 = vld [vmem:[#allocation5 + $0x1c] sm:$0xf]
    %v73 = vld [vmem:[#allocation5 + $0x20] sm:$0xf]
    %v74 = vld [vmem:[#allocation5 + $0x24] sm:$0xf]
    %v75 = vld [vmem:[#allocation5 + $0x28] sm:$0xf]
    %v76 = vld [vmem:[#allocation5 + $0x2c] sm:$0xf]
    %v77 = vld [vmem:[#allocation5 + $0x30] sm:$0xf]
    %v78 = vld [vmem:[#allocation5 + $0x34] sm:$0xf]
    %v79 = vld [vmem:[#allocation5 + $0x38] sm:$0xf]
    %v80 = vld [vmem:[#allocation5 + $0x3c] sm:$0xf]
    %v85 = vunpack.c.l.b16 %v44
    %v86 = vunpack.c.l.b16 %v45
    %v87 = vunpack.c.l.b16 %v46
    %v88 = vunpack.c.l.b16 %v47
    %v89 = vpack.c.b16 %v86, %v85
    %v90 = vpack.c.b16 %v88, %v87
    %v109 = vunpack.c.l.b16 %v65
    %v110 = vunpack.c.l.b16 %v66
    %v111 = vunpack.c.l.b16 %v67
    %v112 = vunpack.c.l.b16 %v68
    %v113 = vunpack.c.l.b16 %v69
    %v114 = vunpack.c.l.b16 %v70
    %v115 = vunpack.c.l.b16 %v71
    %v116 = vunpack.c.l.b16 %v72
    %v117 = vunpack.c.l.b16 %v73
    %v118 = vunpack.c.l.b16 %v74
    %v119 = vunpack.c.l.b16 %v75
    %v120 = vunpack.c.l.b16 %v76
    %v121 = vunpack.c.l.b16 %v77
    %v122 = vunpack.c.l.b16 %v78
    %v123 = vunpack.c.l.b16 %v79
    %v124 = vunpack.c.l.b16 %v80
    %v125 = vpack.c.b16 %v110, %v109
    %v126 = vpack.c.b16 %v112, %v111
    %v127 = vpack.c.b16 %v114, %v113
    %v128 = vpack.c.b16 %v116, %v115
    %v129 = vpack.c.b16 %v118, %v117
    %v130 = vpack.c.b16 %v120, %v119
    %v131 = vpack.c.b16 %v122, %v121
    %v132 = vpack.c.b16 %v124, %v123
    %141 = vmatprep.subr.bf16.mxu0 0
    %142 = vmatpush1.bf16.msra.mxu0 %v125
    %143 = vmatprep.subr.bf16.mxu0 0
    %144 = vmatpush1.bf16.msra.mxu0 %v126
    %145 = vmatprep.subr.bf16.mxu0 0
    %146 = vmatpush1.bf16.msra.mxu0 %v127
    %147 = vmatprep.subr.bf16.mxu0 0
    %148 = vmatpush1.bf16.msra.mxu0 %v128
    %149 = vmatprep.subr.bf16.mxu0 0
    %150 = vmatpush1.bf16.msra.mxu0 %v129
    %151 = vmatprep.subr.bf16.mxu0 0
    %152 = vmatpush1.bf16.msra.mxu0 %v130
    %153 = vmatprep.subr.bf16.mxu0 0
    %154 = vmatpush1.bf16.msra.mxu0 %v131
    %155 = vmatprep.subr.bf16.mxu0 0
    %156 = vmatpush1.bf16.msra.mxu0 %v132
    %157 = vmatprep.subr.bf16.mxu0 0
    %158 = vmatpush1.bf16.msra.mxu0 0
    %159 = vmatprep.subr.bf16.mxu0 0
    %160 = vmatpush1.bf16.msra.mxu0 0
    %161 = vmatprep.subr.bf16.mxu0 0
    %162 = vmatpush1.bf16.msra.mxu0 0
    %163 = vmatprep.subr.bf16.mxu0 0
    %164 = vmatpush1.bf16.msra.mxu0 0
    %165 = vmatprep.subr.bf16.mxu0 0
    %166 = vmatpush1.bf16.msra.mxu0 0
    %167 = vmatprep.subr.bf16.mxu0 0
    %168 = vmatpush1.bf16.msra.mxu0 0
    %169 = vmatprep.subr.bf16.mxu0 0
    %170 = vmatpush1.bf16.msra.mxu0 0
    %171 = vmatprep.subr.bf16.mxu0 0
    %172 = vmatpush1.bf16.msra.mxu0 0
    %173 = vmatprep.mubr.bf16.mxu0 0
    %174 = vmatmul.mubr.bf16.gmra.mrb[0].mxu0 %v89
    %v175 = vpop.f32.mrb[0].mxu0
    %v176 = vadd.f32 0.0, %v175
    %v177 = vpop.f32.mrb[0].mxu0
    %v178 = vpop.f32.mrb[0].mxu0
    %v179 = vadd.f32 0.0, %v178
    %v180 = vpop.f32.mrb[0].mxu0
    %181 = vmatprep.mubr.bf16.mxu0 0
    %182 = vmatmul.mubr.bf16.gmra.mrb[0].mxu0 %v90
    %v183 = vpop.f32.mrb[0].mxu0
    %v184 = vadd.f32 0.0, %v183
    %v185 = vpop.f32.mrb[0].mxu0
    %v186 = vpop.f32.mrb[0].mxu0
    %v187 = vadd.f32 0.0, %v186
    %v188 = vpop.f32.mrb[0].mxu0
    %189 = vdwg.mxu0
    %s190 = scalar_lea.vmem [#allocation5], 128
    %v191 = vld [vmem:[%s190] sm:$0xf]
    %v192 = vld [vmem:[%s190 + $0x4] sm:$0xf]
    %v193 = vld [vmem:[%s190 + $0x8] sm:$0xf]
    %v194 = vld [vmem:[%s190 + $0xc] sm:$0xf]
    %v195 = vld [vmem:[%s190 + $0x10] sm:$0xf]
    %v196 = vld [vmem:[%s190 + $0x14] sm:$0xf]
    %v197 = vld [vmem:[%s190 + $0x18] sm:$0xf]
    %v198 = vld [vmem:[%s190 + $0x1c] sm:$0xf]
    %v199 = vld [vmem:[%s190 + $0x20] sm:$0xf]
    %v200 = vld [vmem:[%s190 + $0x24] sm:$0xf]
    %v201 = vld [vmem:[%s190 + $0x28] sm:$0xf]
    %v202 = vld [vmem:[%s190 + $0x2c] sm:$0xf]
    %v203 = vld [vmem:[%s190 + $0x30] sm:$0xf]
    %v204 = vld [vmem:[%s190 + $0x34] sm:$0xf]
    %v205 = vld [vmem:[%s190 + $0x38] sm:$0xf]
    %v206 = vld [vmem:[%s190 + $0x3c] sm:$0xf]
    %v223 = vunpack.c.l.b16 %v191
    %v224 = vunpack.c.l.b16 %v192
    %v225 = vunpack.c.l.b16 %v193
    %v226 = vunpack.c.l.b16 %v194
    %v227 = vunpack.c.l.b16 %v195
    %v228 = vunpack.c.l.b16 %v196
    %v229 = vunpack.c.l.b16 %v197
    %v230 = vunpack.c.l.b16 %v198
    %v231 = vunpack.c.l.b16 %v199
    %v232 = vunpack.c.l.b16 %v200
    %v233 = vunpack.c.l.b16 %v201
    %v234 = vunpack.c.l.b16 %v202
    %v235 = vunpack.c.l.b16 %v203
    %v236 = vunpack.c.l.b16 %v204
    %v237 = vunpack.c.l.b16 %v205
    %v238 = vunpack.c.l.b16 %v206
    %v239 = vpack.c.b16 %v224, %v223
    %v240 = vpack.c.b16 %v226, %v225
    %v241 = vpack.c.b16 %v228, %v227
    %v242 = vpack.c.b16 %v230, %v229
    %v243 = vpack.c.b16 %v232, %v231
    %v244 = vpack.c.b16 %v234, %v233
    %v245 = vpack.c.b16 %v236, %v235
    %v246 = vpack.c.b16 %v238, %v237
    %255 = vmatprep.subr.bf16.mxu0 0
    %256 = vmatpush1.bf16.msra.mxu0 %v239
    %257 = vmatprep.subr.bf16.mxu0 0
    %258 = vmatpush1.bf16.msra.mxu0 %v240
    %259 = vmatprep.subr.bf16.mxu0 0
    %260 = vmatpush1.bf16.msra.mxu0 %v241
    %261 = vmatprep.subr.bf16.mxu0 0
    %262 = vmatpush1.bf16.msra.mxu0 %v242
    %263 = vmatprep.subr.bf16.mxu0 0
    %264 = vmatpush1.bf16.msra.mxu0 %v243
    %265 = vmatprep.subr.bf16.mxu0 0
    %266 = vmatpush1.bf16.msra.mxu0 %v244
    %267 = vmatprep.subr.bf16.mxu0 0
    %268 = vmatpush1.bf16.msra.mxu0 %v245
    %269 = vmatprep.subr.bf16.mxu0 0
    %270 = vmatpush1.bf16.msra.mxu0 %v246
    %271 = vmatprep.subr.bf16.mxu0 0
    %272 = vmatpush1.bf16.msra.mxu0 0
    %273 = vmatprep.subr.bf16.mxu0 0
    %274 = vmatpush1.bf16.msra.mxu0 0
    %275 = vmatprep.subr.bf16.mxu0 0
    %276 = vmatpush1.bf16.msra.mxu0 0
    %277 = vmatprep.subr.bf16.mxu0 0
    %278 = vmatpush1.bf16.msra.mxu0 0
    %279 = vmatprep.subr.bf16.mxu0 0
    %280 = vmatpush1.bf16.msra.mxu0 0
    %281 = vmatprep.subr.bf16.mxu0 0
    %282 = vmatpush1.bf16.msra.mxu0 0
    %283 = vmatprep.subr.bf16.mxu0 0
    %284 = vmatpush1.bf16.msra.mxu0 0
    %285 = vmatprep.subr.bf16.mxu0 0
    %286 = vmatpush1.bf16.msra.mxu0 0
    %287 = vmatprep.mubr.bf16.mxu0 0
    %288 = vmatmul.mubr.bf16.gmra.mrb[0].mxu0 %v89
    %v289 = vpop.f32.mrb[0].mxu0
    %v290 = vadd.f32 0.0, %v289
    %v291 = vpop.f32.mrb[0].mxu0
    %v292 = vpop.f32.mrb[0].mxu0
    %v293 = vadd.f32 0.0, %v292
    %v294 = vpop.f32.mrb[0].mxu0
    %295 = vmatprep.mubr.bf16.mxu0 0
    %296 = vmatmul.mubr.bf16.gmra.mrb[0].mxu0 %v90
    %v297 = vpop.f32.mrb[0].mxu0
    %v298 = vadd.f32 0.0, %v297
    %v299 = vpop.f32.mrb[0].mxu0
    %v300 = vpop.f32.mrb[0].mxu0
    %v301 = vadd.f32 0.0, %v300
    %v302 = vpop.f32.mrb[0].mxu0
    %303 = vdwg.mxu0
    %v304 = vlaneseq
    %v305 = vshrl.u32 %v304, 7
    %v306 = vadd.s32 %v305, 8
    %v307 = vadd.s32 %v305, 16
    %v308 = vadd.s32 %v305, 24
    %vm309 = vcmp.lt.s32.totalorder %v305, 0
    %v310 = vsub.s32 0, %v305
    %v311 = vsel %vm309, %v310, %v305
    %v312 = vshrl.u32 %v311, 4
    %v313 = vand.u32 %v311, 15
    %v314 = vsub.s32 0, %v313
    %v315 = vsel %vm309, %v314, %v313
    %vm316 = vcmp.lt.s32.totalorder %v306, 0
    %v317 = vsub.s32 0, %v306
    %v318 = vsel %vm316, %v317, %v306
    %v319 = vshrl.u32 %v318, 4
    %v320 = vand.u32 %v318, 15
    %v321 = vsub.s32 0, %v320
    %v322 = vsel %vm316, %v321, %v320
    %vm323 = vcmp.lt.s32.totalorder %v307, 0
    %v324 = vsub.s32 0, %v307
    %v325 = vsel %vm323, %v324, %v307
    %v326 = vshrl.u32 %v325, 4
    %v327 = vand.u32 %v325, 15
    %v328 = vsub.s32 0, %v327
    %v329 = vsel %vm323, %v328, %v327
    %vm330 = vcmp.lt.s32.totalorder %v308, 0
    %v331 = vsub.s32 0, %v308
    %v332 = vsel %vm330, %v331, %v308
    %v333 = vshrl.u32 %v332, 4
    %v334 = vand.u32 %v332, 15
    %v335 = vsub.s32 0, %v334
    %v336 = vsel %vm330, %v335, %v334
    %vm337 = vcmp.ne.s32.totalorder %v315, 0
    %vm338 = vcmp.ne.s32.totalorder %v322, 0
    %vm339 = vcmp.ne.s32.totalorder %v329, 0
    %vm340 = vcmp.ne.s32.totalorder %v336, 0
    %vm341 = vcmp.lt.s32.totalorder %v315, 0
    %vm342 = vcmp.lt.s32.totalorder %v322, 0
    %vm343 = vcmp.lt.s32.totalorder %v329, 0
    %vm344 = vcmp.lt.s32.totalorder %v336, 0
    %vm345 = vmand %vm341, %vm337
    %vm346 = vmand %vm342, %vm338
    %vm347 = vmand %vm343, %vm339
    %vm348 = vmand %vm344, %vm340
    %v349 = vadd.s32 %v315, 16
    %v350 = vadd.s32 %v322, 16
    %v351 = vadd.s32 %v329, 16
    %v352 = vadd.s32 %v336, 16
    %v353 = vsel %vm345, %v349, %v315
    %v354 = vsel %vm346, %v350, %v322
    %v355 = vsel %vm347, %v351, %v329
    %v356 = vsel %vm348, %v352, %v336
    %vm357 = vcmp.ne.s32.totalorder %v353, 0
    %vm358 = vcmp.ne.s32.totalorder %v354, 0
    %vm359 = vcmp.ne.s32.totalorder %v355, 0
    %vm360 = vcmp.ne.s32.totalorder %v356, 0
    %vm361 = vcmp.ne.s32.totalorder %v353, 15
    %vm362 = vcmp.ne.s32.totalorder %v354, 15
    %vm363 = vcmp.ne.s32.totalorder %v355, 15
    %vm364 = vcmp.ne.s32.totalorder %v356, 15
    %v365 = vld [vmem:[%s2] sm:$0x1]
    %v367 = vlaneseq
    %v368 = vshrl.u32 %v367, 7
    %v369 = vsub.s32 0, %v368
    %v370 = vrot.slane %v365, %v369
    %v388 = vunpack.c.l.b16 %v49
    %v389 = vunpack.c.l.b16 %v50
    %v390 = vunpack.c.l.b16 %v51
    %v391 = vunpack.c.l.b16 %v52
    %v392 = vunpack.c.l.b16 %v53
    %v393 = vunpack.c.l.b16 %v54
    %v394 = vunpack.c.l.b16 %v55
    %v395 = vunpack.c.l.b16 %v56
    %v396 = vunpack.c.l.b16 %v57
    %v397 = vunpack.c.l.b16 %v58
    %v398 = vunpack.c.l.b16 %v59
    %v399 = vunpack.c.l.b16 %v60
    %v400 = vunpack.c.l.b16 %v61
    %v401 = vunpack.c.l.b16 %v62
    %v402 = vunpack.c.l.b16 %v63
    %v403 = vunpack.c.l.b16 %v64
    %v404 = vpack.c.b16 %v389, %v388
    %v405 = vpack.c.b16 %v391, %v390
    %v406 = vpack.c.b16 %v393, %v392
    %v407 = vpack.c.b16 %v395, %v394
    %v408 = vpack.c.b16 %v397, %v396
    %v409 = vpack.c.b16 %v399, %v398
    %v410 = vpack.c.b16 %v401, %v400
    %v411 = vpack.c.b16 %v403, %v402
    %420 = vmatprep.subr.bf16.mxu0 0
    %421 = vmatpush1.bf16.msra.mxu0 %v404
    %422 = vmatprep.subr.bf16.mxu0 0
    %423 = vmatpush1.bf16.msra.mxu0 %v405
    %424 = vmatprep.subr.bf16.mxu0 0
    %425 = vmatpush1.bf16.msra.mxu0 %v406
    %426 = vmatprep.subr.bf16.mxu0 0
    %427 = vmatpush1.bf16.msra.mxu0 %v407
    %428 = vmatprep.subr.bf16.mxu0 0
    %429 = vmatpush1.bf16.msra.mxu0 %v408
    %430 = vmatprep.subr.bf16.mxu0 0
    %431 = vmatpush1.bf16.msra.mxu0 %v409
    %432 = vmatprep.subr.bf16.mxu0 0
    %433 = vmatpush1.bf16.msra.mxu0 %v410
    %434 = vmatprep.subr.bf16.mxu0 0
    %435 = vmatpush1.bf16.msra.mxu0 %v411
    %436 = vmatprep.subr.bf16.mxu0 0
    %437 = vmatpush1.bf16.msra.mxu0 0
    %438 = vmatprep.subr.bf16.mxu0 0
    %439 = vmatpush1.bf16.msra.mxu0 0
    %440 = vmatprep.subr.bf16.mxu0 0
    %441 = vmatpush1.bf16.msra.mxu0 0
    %442 = vmatprep.subr.bf16.mxu0 0
    %443 = vmatpush1.bf16.msra.mxu0 0
    %444 = vmatprep.subr.bf16.mxu0 0
    %445 = vmatpush1.bf16.msra.mxu0 0
    %446 = vmatprep.subr.bf16.mxu0 0
    %447 = vmatpush1.bf16.msra.mxu0 0
    %448 = vmatprep.subr.bf16.mxu0 0
    %449 = vmatpush1.bf16.msra.mxu0 0
    %450 = vmatprep.subr.bf16.mxu0 0
    %451 = vmatpush1.bf16.msra.mxu0 0
    %452 = vmatprep.mubr.bf16.mxu0 0
    %453 = vmatmul.mubr.bf16.gmra.mrb[0].mxu0 %v89
    %v454 = vpop.f32.mrb[0].mxu0
    %v455 = vadd.f32 %v370, %v454
    %v456 = vpop.f32.mrb[0].mxu0
    %v457 = vpop.f32.mrb[0].mxu0
    %v458 = vadd.f32 %v370, %v457
    %v459 = vpop.f32.mrb[0].mxu0
    %460 = vmatprep.mubr.bf16.mxu0 0
    %461 = vmatmul.mubr.bf16.gmra.mrb[0].mxu0 %v90
    %v462 = vpop.f32.mrb[0].mxu0
    %v463 = vadd.f32 %v370, %v462
    %v464 = vpop.f32.mrb[0].mxu0
    %v465 = vpop.f32.mrb[0].mxu0
    %v466 = vadd.f32 %v370, %v465
    %v467 = vpop.f32.mrb[0].mxu0
    %468 = vdwg.mxu0
    %v469 = vrot.slane %v176, 7
    %v470 = vrot.slane %v179, 7
    %v471 = vrot.slane %v184, 7
    %v472 = vrot.slane %v187, 7
    %vm473 = vcmp.lt.s32.totalorder %v305, 1
    %v474 = vsel %vm473, %v471, %v472
    %v475 = vsel %vm473, %v470, %v471
    %v476 = vsel %vm473, %v469, %v470
    %v477 = vsel %vm473, %v472, %v469
    %v478 = vsel %vm357, %v477, 0.0
    %v479 = vsel %vm358, %v476, 0.0
    %v480 = vsel %vm359, %v475, 0.0
    %v481 = vsel %vm360, %v474, 0.0
    %v482 = vadd.f32 %v455, %v478
    %v483 = vadd.f32 %v458, %v479
    %v484 = vadd.f32 %v463, %v480
    %v485 = vadd.f32 %v466, %v481
    %v486 = vrot.slane %v290, 1
    %v487 = vrot.slane %v293, 1
    %v488 = vrot.slane %v298, 1
    %v489 = vrot.slane %v301, 1
    %vm490 = vcmp.lt.s32.totalorder %v305, 7
    %v491 = vsel %vm490, %v488, %v489
    %v492 = vsel %vm490, %v487, %v488
    %v493 = vsel %vm490, %v486, %v487
    %v494 = vsel %vm490, %v489, %v486
    %v495 = vsel %vm361, %v493, 0.0
    %v496 = vsel %vm362, %v492, 0.0
    %v497 = vsel %vm363, %v491, 0.0
    %v498 = vsel %vm364, %v494, 0.0
    %v499 = vadd.f32 %v482, %v495
    %v500 = vadd.f32 %v483, %v496
    %v501 = vadd.f32 %v484, %v497
    %v502 = vadd.f32 %v485, %v498
    %v503 = vadd.s32 %v305, 32
    %v504 = vadd.s32 %v305, 40
    %v505 = vadd.s32 %v305, 48
    %v506 = vadd.s32 %v305, 56
    %v507 = vadd.s32 %v305, 64
    %v508 = vadd.s32 %v305, 72
    %v509 = vadd.s32 %v305, 80
    %v510 = vadd.s32 %v305, 88
    %v511 = vadd.s32 %v305, 96
    %v512 = vadd.s32 %v305, 104
    %v513 = vadd.s32 %v305, 112
    %v514 = vadd.s32 %v305, 120
    %vm515 = vcmp.lt.s32.totalorder %v305, 0
    %v516 = vsub.s32 0, %v305
    %v517 = vsel %vm515, %v516, %v305
    %v518 = vshrl.u32 %v517, 3
    %v519 = vand.u32 %v517, 7
    %v520 = vsub.s32 0, %v519
    %v521 = vsel %vm515, %v520, %v519
    %vm522 = vcmp.lt.s32.totalorder %v306, 0
    %v523 = vsub.s32 0, %v306
    %v524 = vsel %vm522, %v523, %v306
    %v525 = vshrl.u32 %v524, 3
    %v526 = vand.u32 %v524, 7
    %v527 = vsub.s32 0, %v526
    %v528 = vsel %vm522, %v527, %v526
    %vm529 = vcmp.lt.s32.totalorder %v307, 0
    %v530 = vsub.s32 0, %v307
    %v531 = vsel %vm529, %v530, %v307
    %v532 = vshrl.u32 %v531, 3
    %v533 = vand.u32 %v531, 7
    %v534 = vsub.s32 0, %v533
    %v535 = vsel %vm529, %v534, %v533
    %vm536 = vcmp.lt.s32.totalorder %v308, 0
    %v537 = vsub.s32 0, %v308
    %v538 = vsel %vm536, %v537, %v308
    %v539 = vshrl.u32 %v538, 3
    %v540 = vand.u32 %v538, 7
    %v541 = vsub.s32 0, %v540
    %v542 = vsel %vm536, %v541, %v540
    %vm543 = vcmp.lt.s32.totalorder %v503, 0
    %v544 = vsub.s32 0, %v503
    %v545 = vsel %vm543, %v544, %v503
    %v546 = vshrl.u32 %v545, 3
    %v547 = vand.u32 %v545, 7
    %v548 = vsub.s32 0, %v547
    %v549 = vsel %vm543, %v548, %v547
    %vm550 = vcmp.lt.s32.totalorder %v504, 0
    %v551 = vsub.s32 0, %v504
    %v552 = vsel %vm550, %v551, %v504
    %v553 = vshrl.u32 %v552, 3
    %v554 = vand.u32 %v552, 7
    %v555 = vsub.s32 0, %v554
    %v556 = vsel %vm550, %v555, %v554
    %vm557 = vcmp.lt.s32.totalorder %v505, 0
    %v558 = vsub.s32 0, %v505
    %v559 = vsel %vm557, %v558, %v505
    %v560 = vshrl.u32 %v559, 3
    %v561 = vand.u32 %v559, 7
    %v562 = vsub.s32 0, %v561
    %v563 = vsel %vm557, %v562, %v561
    %vm564 = vcmp.lt.s32.totalorder %v506, 0
    %v565 = vsub.s32 0, %v506
    %v566 = vsel %vm564, %v565, %v506
    %v567 = vshrl.u32 %v566, 3
    %v568 = vand.u32 %v566, 7
    %v569 = vsub.s32 0, %v568
    %v570 = vsel %vm564, %v569, %v568
    %vm571 = vcmp.lt.s32.totalorder %v507, 0
    %v572 = vsub.s32 0, %v507
    %v573 = vsel %vm571, %v572, %v507
    %v574 = vshrl.u32 %v573, 3
    %v575 = vand.u32 %v573, 7
    %v576 = vsub.s32 0, %v575
    %v577 = vsel %vm571, %v576, %v575
    %vm578 = vcmp.lt.s32.totalorder %v508, 0
    %v579 = vsub.s32 0, %v508
    %v580 = vsel %vm578, %v579, %v508
    %v581 = vshrl.u32 %v580, 3
    %v582 = vand.u32 %v580, 7
    %v583 = vsub.s32 0, %v582
    %v584 = vsel %vm578, %v583, %v582
    %vm585 = vcmp.lt.s32.totalorder %v509, 0
    %v586 = vsub.s32 0, %v509
    %v587 = vsel %vm585, %v586, %v509
    %v588 = vshrl.u32 %v587, 3
    %v589 = vand.u32 %v587, 7
    %v590 = vsub.s32 0, %v589
    %v591 = vsel %vm585, %v590, %v589
    %vm592 = vcmp.lt.s32.totalorder %v510, 0
    %v593 = vsub.s32 0, %v510
    %v594 = vsel %vm592, %v593, %v510
    %v595 = vshrl.u32 %v594, 3
    %v596 = vand.u32 %v594, 7
    %v597 = vsub.s32 0, %v596
    %v598 = vsel %vm592, %v597, %v596
    %vm599 = vcmp.lt.s32.totalorder %v511, 0
    %v600 = vsub.s32 0, %v511
    %v601 = vsel %vm599, %v600, %v511
    %v602 = vshrl.u32 %v601, 3
    %v603 = vand.u32 %v601, 7
    %v604 = vsub.s32 0, %v603
    %v605 = vsel %vm599, %v604, %v603
    %vm606 = vcmp.lt.s32.totalorder %v512, 0
    %v607 = vsub.s32 0, %v512
    %v608 = vsel %vm606, %v607, %v512
    %v609 = vshrl.u32 %v608, 3
    %v610 = vand.u32 %v608, 7
    %v611 = vsub.s32 0, %v610
    %v612 = vsel %vm606, %v611, %v610
    %vm613 = vcmp.lt.s32.totalorder %v513, 0
    %v614 = vsub.s32 0, %v513
    %v615 = vsel %vm613, %v614, %v513
    %v616 = vshrl.u32 %v615, 3
    %v617 = vand.u32 %v615, 7
    %v618 = vsub.s32 0, %v617
    %v619 = vsel %vm613, %v618, %v617
    %vm620 = vcmp.lt.s32.totalorder %v514, 0
    %v621 = vsub.s32 0, %v514
    %v622 = vsel %vm620, %v621, %v514
    %v623 = vshrl.u32 %v622, 3
    %v624 = vand.u32 %v622, 7
    %v625 = vsub.s32 0, %v624
    %v626 = vsel %vm620, %v625, %v624
    %vm627 = vcmp.ne.s32.totalorder %v521, 0
    %vm628 = vcmp.ne.s32.totalorder %v528, 0
    %vm629 = vcmp.ne.s32.totalorder %v535, 0
    %vm630 = vcmp.ne.s32.totalorder %v542, 0
    %vm631 = vcmp.ne.s32.totalorder %v549, 0
    %vm632 = vcmp.ne.s32.totalorder %v556, 0
    %vm633 = vcmp.ne.s32.totalorder %v563, 0
    %vm634 = vcmp.ne.s32.totalorder %v570, 0
    %vm635 = vcmp.ne.s32.totalorder %v577, 0
    %vm636 = vcmp.ne.s32.totalorder %v584, 0
    %vm637 = vcmp.ne.s32.totalorder %v591, 0
    %vm638 = vcmp.ne.s32.totalorder %v598, 0
    %vm639 = vcmp.ne.s32.totalorder %v605, 0
    %vm640 = vcmp.ne.s32.totalorder %v612, 0
    %vm641 = vcmp.ne.s32.totalorder %v619, 0
    %vm642 = vcmp.ne.s32.totalorder %v626, 0
    %vm643 = vcmp.lt.s32.totalorder %v521, 0
    %vm644 = vcmp.lt.s32.totalorder %v528, 0
    %vm645 = vcmp.lt.s32.totalorder %v535, 0
    %vm646 = vcmp.lt.s32.totalorder %v542, 0
    %vm647 = vcmp.lt.s32.totalorder %v549, 0
    %vm648 = vcmp.lt.s32.totalorder %v556, 0
    %vm649 = vcmp.lt.s32.totalorder %v563, 0
    %vm650 = vcmp.lt.s32.totalorder %v570, 0
    %vm651 = vcmp.lt.s32.totalorder %v577, 0
    %vm652 = vcmp.lt.s32.totalorder %v584, 0
    %vm653 = vcmp.lt.s32.totalorder %v591, 0
    %vm654 = vcmp.lt.s32.totalorder %v598, 0
    %vm655 = vcmp.lt.s32.totalorder %v605, 0
    %vm656 = vcmp.lt.s32.totalorder %v612, 0
    %vm657 = vcmp.lt.s32.totalorder %v619, 0
    %vm658 = vcmp.lt.s32.totalorder %v626, 0
    %vm659 = vmand %vm643, %vm627
    %vm660 = vmand %vm644, %vm628
    %vm661 = vmand %vm645, %vm629
    %vm662 = vmand %vm646, %vm630
    %vm663 = vmand %vm647, %vm631
    %vm664 = vmand %vm648, %vm632
    %vm665 = vmand %vm649, %vm633
    %vm666 = vmand %vm650, %vm634
    %vm667 = vmand %vm651, %vm635
    %vm668 = vmand %vm652, %vm636
    %vm669 = vmand %vm653, %vm637
    %vm670 = vmand %vm654, %vm638
    %vm671 = vmand %vm655, %vm639
    %vm672 = vmand %vm656, %vm640
    %vm673 = vmand %vm657, %vm641
    %vm674 = vmand %vm658, %vm642
    %v675 = vadd.s32 %v521, 8
    %v676 = vadd.s32 %v528, 8
    %v677 = vadd.s32 %v535, 8
    %v678 = vadd.s32 %v542, 8
    %v679 = vadd.s32 %v549, 8
    %v680 = vadd.s32 %v556, 8
    %v681 = vadd.s32 %v563, 8
    %v682 = vadd.s32 %v570, 8
    %v683 = vadd.s32 %v577, 8
    %v684 = vadd.s32 %v584, 8
    %v685 = vadd.s32 %v591, 8
    %v686 = vadd.s32 %v598, 8
    %v687 = vadd.s32 %v605, 8
    %v688 = vadd.s32 %v612, 8
    %v689 = vadd.s32 %v619, 8
    %v690 = vadd.s32 %v626, 8
    %v691 = vsel %vm659, %v675, %v521
    %v692 = vsel %vm660, %v676, %v528
    %v693 = vsel %vm661, %v677, %v535
    %v694 = vsel %vm662, %v678, %v542
    %v695 = vsel %vm663, %v679, %v549
    %v696 = vsel %vm664, %v680, %v556
    %v697 = vsel %vm665, %v681, %v563
    %v698 = vsel %vm666, %v682, %v570
    %v699 = vsel %vm667, %v683, %v577
    %v700 = vsel %vm668, %v684, %v584
    %v701 = vsel %vm669, %v685, %v591
    %v702 = vsel %vm670, %v686, %v598
    %v703 = vsel %vm671, %v687, %v605
    %v704 = vsel %vm672, %v688, %v612
    %v705 = vsel %vm673, %v689, %v619
    %v706 = vsel %vm674, %v690, %v626
    %v707 = vlaneseq
    %v708 = vand.u32 %v707, 127
    %vm709 = vcmp.eq.s32.totalorder %v691, %v708
    %vm710 = vcmp.eq.s32.totalorder %v692, %v708
    %vm711 = vcmp.eq.s32.totalorder %v693, %v708
    %vm712 = vcmp.eq.s32.totalorder %v694, %v708
    %vm713 = vcmp.eq.s32.totalorder %v695, %v708
    %vm714 = vcmp.eq.s32.totalorder %v696, %v708
    %vm715 = vcmp.eq.s32.totalorder %v697, %v708
    %vm716 = vcmp.eq.s32.totalorder %v698, %v708
    %vm717 = vcmp.eq.s32.totalorder %v699, %v708
    %vm718 = vcmp.eq.s32.totalorder %v700, %v708
    %vm719 = vcmp.eq.s32.totalorder %v701, %v708
    %vm720 = vcmp.eq.s32.totalorder %v702, %v708
    %vm721 = vcmp.eq.s32.totalorder %v703, %v708
    %vm722 = vcmp.eq.s32.totalorder %v704, %v708
    %vm723 = vcmp.eq.s32.totalorder %v705, %v708
    %vm724 = vcmp.eq.s32.totalorder %v706, %v708
    %v725 = vsel %vm709, 1, 0
    %v726 = vsel %vm710, 1, 0
    %v727 = vsel %vm711, 1, 0
    %v728 = vsel %vm712, 1, 0
    %v729 = vsel %vm713, 1, 0
    %v730 = vsel %vm714, 1, 0
    %v731 = vsel %vm715, 1, 0
    %v732 = vsel %vm716, 1, 0
    %v733 = vsel %vm717, 1, 0
    %v734 = vsel %vm718, 1, 0
    %v735 = vsel %vm719, 1, 0
    %v736 = vsel %vm720, 1, 0
    %v737 = vsel %vm721, 1, 0
    %v738 = vsel %vm722, 1, 0
    %v739 = vsel %vm723, 1, 0
    %v740 = vsel %vm724, 1, 0
    %v741 = vcvt.s32.f32 %v725
    %v742 = vcvt.s32.f32 %v726
    %v743 = vcvt.s32.f32 %v727
    %v744 = vcvt.s32.f32 %v728
    %v745 = vcvt.s32.f32 %v729
    %v746 = vcvt.s32.f32 %v730
    %v747 = vcvt.s32.f32 %v731
    %v748 = vcvt.s32.f32 %v732
    %v749 = vcvt.s32.f32 %v733
    %v750 = vcvt.s32.f32 %v734
    %v751 = vcvt.s32.f32 %v735
    %v752 = vcvt.s32.f32 %v736
    %v753 = vcvt.s32.f32 %v737
    %v754 = vcvt.s32.f32 %v738
    %v755 = vcvt.s32.f32 %v739
    %v756 = vcvt.s32.f32 %v740
    %vm757 = vcmp.lt.s32.totalorder %v708, 0
    %v758 = vsub.s32 0, %v708
    %v759 = vsel %vm757, %v758, %v708
    %v760 = vshrl.u32 %v759, 3
    %v761 = vand.u32 %v759, 7
    %v762 = vsub.s32 0, %v761
    %v763 = vsel %vm757, %v762, %v761
    %vm764 = vcmp.ne.s32.totalorder %v763, 0
    %vm765 = vcmp.lt.s32.totalorder %v763, 0
    %vm766 = vmand %vm765, %vm764
    %v767 = vadd.s32 %v763, 8
    %v768 = vsel %vm766, %v767, %v763
    %vm769 = vcmp.eq.s32.totalorder %v768, %v305
    %v770 = vsel %vm769, 1, 0
    %v771 = vcvt.s32.f32 %v770
    %v772 = vadd.f32 %v499, %v500
    %v773 = vrot.slane %v772, 4
    %v774 = vadd.f32 %v772, %v773
    %v775 = vrot.slane %v774, 2
    %v776 = vadd.f32 %v774, %v775
    %v777 = vrot.slane %v776, 1
    %v778 = vadd.f32 %v776, %v777
    %779 = vmatprep.subr.mxu0 0.0
    %780 = vmatpush1.msra.mxu0 %v741
    %781 = vmatprep.subr.mxu0 0.0
    %782 = vmatpush1.msra.mxu0 %v742
    %783 = vmatprep.subr.mxu0 0.0
    %784 = vmatpush1.msra.mxu0 %v743
    %785 = vmatprep.subr.mxu0 0.0
    %786 = vmatpush1.msra.mxu0 %v744
    %787 = vmatprep.subr.mxu0 0.0
    %788 = vmatpush1.msra.mxu0 %v745
    %789 = vmatprep.subr.mxu0 0.0
    %790 = vmatpush1.msra.mxu0 %v746
    %791 = vmatprep.subr.mxu0 0.0
    %792 = vmatpush1.msra.mxu0 %v747
    %793 = vmatprep.subr.mxu0 0.0
    %794 = vmatpush1.msra.mxu0 %v748
    %795 = vmatprep.subr.mxu0 0.0
    %796 = vmatpush1.msra.mxu0 %v749
    %797 = vmatprep.subr.mxu0 0.0
    %798 = vmatpush1.msra.mxu0 %v750
    %799 = vmatprep.subr.mxu0 0.0
    %800 = vmatpush1.msra.mxu0 %v751
    %801 = vmatprep.subr.mxu0 0.0
    %802 = vmatpush1.msra.mxu0 %v752
    %803 = vmatprep.subr.mxu0 0.0
    %804 = vmatpush1.msra.mxu0 %v753
    %805 = vmatprep.subr.mxu0 0.0
    %806 = vmatpush1.msra.mxu0 %v754
    %807 = vmatprep.subr.mxu0 0.0
    %808 = vmatpush1.msra.mxu0 %v755
    %809 = vmatprep.subr.mxu0 0.0
    %810 = vmatpush1.msra.mxu0 %v756
    %811 = vmatprep.subr.mxu0 0.0
    %812 = vmatpush1.msra.mxu0 0.0
    %813 = vmatprep.subr.mxu0 0.0
    %814 = vmatpush1.msra.mxu0 0.0
    %815 = vmatprep.subr.mxu0 0.0
    %816 = vmatpush1.msra.mxu0 0.0
    %817 = vmatprep.subr.mxu0 0.0
    %818 = vmatpush1.msra.mxu0 0.0
    %819 = vmatprep.subr.mxu0 0.0
    %820 = vmatpush1.msra.mxu0 0.0
    %821 = vmatprep.subr.mxu0 0.0
    %822 = vmatpush1.msra.mxu0 0.0
    %823 = vmatprep.subr.mxu0 0.0
    %824 = vmatpush1.msra.mxu0 0.0
    %825 = vmatprep.subr.mxu0 0.0
    %826 = vmatpush1.msra.mxu0 0.0
    %827 = vmatprep.subr.mxu0 0.0
    %828 = vmatpush1.msra.mxu0 0.0
    %829 = vmatprep.subr.mxu0 0.0
    %830 = vmatpush1.msra.mxu0 0.0
    %831 = vmatprep.subr.mxu0 0.0
    %832 = vmatpush1.msra.mxu0 0.0
    %833 = vmatprep.subr.mxu0 0.0
    %834 = vmatpush1.msra.mxu0 0.0
    %835 = vmatprep.subr.mxu0 0.0
    %836 = vmatpush1.msra.mxu0 0.0
    %837 = vmatprep.subr.mxu0 0.0
    %838 = vmatpush1.msra.mxu0 0.0
    %839 = vmatprep.subr.mxu0 0.0
    %840 = vmatpush1.msra.mxu0 0.0
    %841 = vmatprep.subr.mxu0 0.0
    %842 = vmatpush1.msra.mxu0 0.0
    %843 = vmatprep.mubr.f32.mxu0 0.0
    %844 = vmatmul.mubr.f32.gmra.mrb[0].mxu0 %v778
    %v845 = vpop.f32.mrb[0].mxu0
    %v846 = vadd.f32 0.0, %v845
    %v847 = vpop.f32.mrb[0].mxu0
    %848 = vdwg.mxu0
    %v849 = vmul.f32 %v846, 0.00390625
    %vm850 = vcmask 64512
    %v852 = vsel %vm850, %v849, 0
    %854 = vmatprep.subr.mxu0 0.0
    %855 = vmatpush1.msra.mxu0 %v771
    %856 = vmatprep.subr.mxu0 0.0
    %857 = vmatpush1.msra.mxu0 0.0
    %858 = vmatprep.subr.mxu0 0.0
    %859 = vmatpush1.msra.mxu0 0.0
    %860 = vmatprep.subr.mxu0 0.0
    %861 = vmatpush1.msra.mxu0 0.0
    %862 = vmatprep.subr.mxu0 0.0
    %863 = vmatpush1.msra.mxu0 0.0
    %864 = vmatprep.subr.mxu0 0.0
    %865 = vmatpush1.msra.mxu0 0.0
    %866 = vmatprep.subr.mxu0 0.0
    %867 = vmatpush1.msra.mxu0 0.0
    %868 = vmatprep.subr.mxu0 0.0
    %869 = vmatpush1.msra.mxu0 0.0
    %870 = vmatprep.subr.mxu0 0.0
    %871 = vmatpush1.msra.mxu0 0.0
    %872 = vmatprep.subr.mxu0 0.0
    %873 = vmatpush1.msra.mxu0 0.0
    %874 = vmatprep.subr.mxu0 0.0
    %875 = vmatpush1.msra.mxu0 0.0
    %876 = vmatprep.subr.mxu0 0.0
    %877 = vmatpush1.msra.mxu0 0.0
    %878 = vmatprep.subr.mxu0 0.0
    %879 = vmatpush1.msra.mxu0 0.0
    %880 = vmatprep.subr.mxu0 0.0
    %881 = vmatpush1.msra.mxu0 0.0
    %882 = vmatprep.subr.mxu0 0.0
    %883 = vmatpush1.msra.mxu0 0.0
    %884 = vmatprep.subr.mxu0 0.0
    %885 = vmatpush1.msra.mxu0 0.0
    %886 = vmatprep.subr.mxu0 0.0
    %887 = vmatpush1.msra.mxu0 0.0
    %888 = vmatprep.subr.mxu0 0.0
    %889 = vmatpush1.msra.mxu0 0.0
    %890 = vmatprep.subr.mxu0 0.0
    %891 = vmatpush1.msra.mxu0 0.0
    %892 = vmatprep.subr.mxu0 0.0
    %893 = vmatpush1.msra.mxu0 0.0
    %894 = vmatprep.subr.mxu0 0.0
    %895 = vmatpush1.msra.mxu0 0.0
    %896 = vmatprep.subr.mxu0 0.0
    %897 = vmatpush1.msra.mxu0 0.0
    %898 = vmatprep.subr.mxu0 0.0
    %899 = vmatpush1.msra.mxu0 0.0
    %900 = vmatprep.subr.mxu0 0.0
    %901 = vmatpush1.msra.mxu0 0.0
    %902 = vmatprep.subr.mxu0 0.0
    %903 = vmatpush1.msra.mxu0 0.0
    %904 = vmatprep.subr.mxu0 0.0
    %905 = vmatpush1.msra.mxu0 0.0
    %906 = vmatprep.subr.mxu0 0.0
    %907 = vmatpush1.msra.mxu0 0.0
    %908 = vmatprep.subr.mxu0 0.0
    %909 = vmatpush1.msra.mxu0 0.0
    %910 = vmatprep.subr.mxu0 0.0
    %911 = vmatpush1.msra.mxu0 0.0
    %912 = vmatprep.subr.mxu0 0.0
    %913 = vmatpush1.msra.mxu0 0.0
    %914 = vmatprep.subr.mxu0 0.0
    %915 = vmatpush1.msra.mxu0 0.0
    %916 = vmatprep.subr.mxu0 0.0
    %917 = vmatpush1.msra.mxu0 0.0
    %918 = vmatprep.mubr.f32.mxu0 0.0
    %919 = vmatmul.mubr.f32.gmra.mrb[0].mxu0 %v852
    %v920 = vpop.f32.mrb[0].mxu0
    %v921 = vadd.f32 0.0, %v920
    %v922 = vpop.f32.mrb[0].mxu0
    %923 = vdwg.mxu0
    %v924 = vlaneseq
    %v925 = vshrl.u32 %v924, 7
    %v926 = vsub.s32 0, %v925
    %v927 = vrot.slane %v921, %v926
    %v928 = vsub.f32 %v499, %v927
    %v929 = vsub.f32 %v500, %v927
    %v930 = vmul.f32 %v928, %v928
    %v931 = vmul.f32 %v929, %v929
    %v932 = vadd.f32 %v930, %v931
    %v933 = vrot.slane %v932, 4
    %v934 = vadd.f32 %v932, %v933
    %v935 = vrot.slane %v934, 2
    %v936 = vadd.f32 %v934, %v935
    %v937 = vrot.slane %v936, 1
    %v938 = vadd.f32 %v936, %v937
    %939 = vmatprep.subr.mxu0 0.0
    %940 = vmatpush1.msra.mxu0 %v741
    %941 = vmatprep.subr.mxu0 0.0
    %942 = vmatpush1.msra.mxu0 %v742
    %943 = vmatprep.subr.mxu0 0.0
    %944 = vmatpush1.msra.mxu0 %v743
    %945 = vmatprep.subr.mxu0 0.0
    %946 = vmatpush1.msra.mxu0 %v744
    %947 = vmatprep.subr.mxu0 0.0
    %948 = vmatpush1.msra.mxu0 %v745
    %949 = vmatprep.subr.mxu0 0.0
    %950 = vmatpush1.msra.mxu0 %v746
    %951 = vmatprep.subr.mxu0 0.0
    %952 = vmatpush1.msra.mxu0 %v747
    %953 = vmatprep.subr.mxu0 0.0
    %954 = vmatpush1.msra.mxu0 %v748
    %955 = vmatprep.subr.mxu0 0.0
    %956 = vmatpush1.msra.mxu0 %v749
    %957 = vmatprep.subr.mxu0 0.0
    %958 = vmatpush1.msra.mxu0 %v750
    %959 = vmatprep.subr.mxu0 0.0
    %960 = vmatpush1.msra.mxu0 %v751
    %961 = vmatprep.subr.mxu0 0.0
    %962 = vmatpush1.msra.mxu0 %v752
    %963 = vmatprep.subr.mxu0 0.0
    %964 = vmatpush1.msra.mxu0 %v753
    %965 = vmatprep.subr.mxu0 0.0
    %966 = vmatpush1.msra.mxu0 %v754
    %967 = vmatprep.subr.mxu0 0.0
    %968 = vmatpush1.msra.mxu0 %v755
    %969 = vmatprep.subr.mxu0 0.0
    %970 = vmatpush1.msra.mxu0 %v756
    %971 = vmatprep.subr.mxu0 0.0
    %972 = vmatpush1.msra.mxu0 0.0
    %973 = vmatprep.subr.mxu0 0.0
    %974 = vmatpush1.msra.mxu0 0.0
    %975 = vmatprep.subr.mxu0 0.0
    %976 = vmatpush1.msra.mxu0 0.0
    %977 = vmatprep.subr.mxu0 0.0
    %978 = vmatpush1.msra.mxu0 0.0
    %979 = vmatprep.subr.mxu0 0.0
    %980 = vmatpush1.msra.mxu0 0.0
    %981 = vmatprep.subr.mxu0 0.0
    %982 = vmatpush1.msra.mxu0 0.0
    %983 = vmatprep.subr.mxu0 0.0
    %984 = vmatpush1.msra.mxu0 0.0
    %985 = vmatprep.subr.mxu0 0.0
    %986 = vmatpush1.msra.mxu0 0.0
    %987 = vmatprep.subr.mxu0 0.0
    %988 = vmatpush1.msra.mxu0 0.0
    %989 = vmatprep.subr.mxu0 0.0
    %990 = vmatpush1.msra.mxu0 0.0
    %991 = vmatprep.subr.mxu0 0.0
    %992 = vmatpush1.msra.mxu0 0.0
    %993 = vmatprep.subr.mxu0 0.0
    %994 = vmatpush1.msra.mxu0 0.0
    %995 = vmatprep.subr.mxu0 0.0
    %996 = vmatpush1.msra.mxu0 0.0
    %997 = vmatprep.subr.mxu0 0.0
    %998 = vmatpush1.msra.mxu0 0.0
    %999 = vmatprep.subr.mxu0 0.0
    %1000 = vmatpush1.msra.mxu0 0.0
    %1001 = vmatprep.subr.mxu0 0.0
    %1002 = vmatpush1.msra.mxu0 0.0
    %1003 = vmatprep.mubr.f32.mxu0 0.0
    %1004 = vmatmul.mubr.f32.gmra.mrb[0].mxu0 %v938
    %v1005 = vpop.f32.mrb[0].mxu0
    %v1006 = vadd.f32 0.0, %v1005
    %v1007 = vpop.f32.mrb[0].mxu0
    %1008 = vdwg.mxu0
    %v1009 = vmul.f32 %v1006, 0.00390625
    %v1010 = vadd.f32 %v1009, 1e-05
    %v1011 = vrsqrt.pop %v1010
    %v1013 = vsel %vm850, %v1011, 0
    %1015 = vmatprep.subr.mxu0 0.0
    %1016 = vmatpush1.msra.mxu0 %v771
    %1017 = vmatprep.subr.mxu0 0.0
    %1018 = vmatpush1.msra.mxu0 0.0
    %1019 = vmatprep.subr.mxu0 0.0
    %1020 = vmatpush1.msra.mxu0 0.0
    %1021 = vmatprep.subr.mxu0 0.0
    %1022 = vmatpush1.msra.mxu0 0.0
    %1023 = vmatprep.subr.mxu0 0.0
    %1024 = vmatpush1.msra.mxu0 0.0
    %1025 = vmatprep.subr.mxu0 0.0
    %1026 = vmatpush1.msra.mxu0 0.0
    %1027 = vmatprep.subr.mxu0 0.0
    %1028 = vmatpush1.msra.mxu0 0.0
    %1029 = vmatprep.subr.mxu0 0.0
    %1030 = vmatpush1.msra.mxu0 0.0
    %1031 = vmatprep.subr.mxu0 0.0
    %1032 = vmatpush1.msra.mxu0 0.0
    %1033 = vmatprep.subr.mxu0 0.0
    %1034 = vmatpush1.msra.mxu0 0.0
    %1035 = vmatprep.subr.mxu0 0.0
    %1036 = vmatpush1.msra.mxu0 0.0
    %1037 = vmatprep.subr.mxu0 0.0
    %1038 = vmatpush1.msra.mxu0 0.0
    %1039 = vmatprep.subr.mxu0 0.0
    %1040 = vmatpush1.msra.mxu0 0.0
    %1041 = vmatprep.subr.mxu0 0.0
    %1042 = vmatpush1.msra.mxu0 0.0
    %1043 = vmatprep.subr.mxu0 0.0
    %1044 = vmatpush1.msra.mxu0 0.0
    %1045 = vmatprep.subr.mxu0 0.0
    %1046 = vmatpush1.msra.mxu0 0.0
    %1047 = vmatprep.subr.mxu0 0.0
    %1048 = vmatpush1.msra.mxu0 0.0
    %1049 = vmatprep.subr.mxu0 0.0
    %1050 = vmatpush1.msra.mxu0 0.0
    %1051 = vmatprep.subr.mxu0 0.0
    %1052 = vmatpush1.msra.mxu0 0.0
    %1053 = vmatprep.subr.mxu0 0.0
    %1054 = vmatpush1.msra.mxu0 0.0
    %1055 = vmatprep.subr.mxu0 0.0
    %1056 = vmatpush1.msra.mxu0 0.0
    %1057 = vmatprep.subr.mxu0 0.0
    %1058 = vmatpush1.msra.mxu0 0.0
    %1059 = vmatprep.subr.mxu0 0.0
    %1060 = vmatpush1.msra.mxu0 0.0
    %1061 = vmatprep.subr.mxu0 0.0
    %1062 = vmatpush1.msra.mxu0 0.0
    %1063 = vmatprep.subr.mxu0 0.0
    %1064 = vmatpush1.msra.mxu0 0.0
    %1065 = vmatprep.subr.mxu0 0.0
    %1066 = vmatpush1.msra.mxu0 0.0
    %1067 = vmatprep.subr.mxu0 0.0
    %1068 = vmatpush1.msra.mxu0 0.0
    %1069 = vmatprep.subr.mxu0 0.0
    %1070 = vmatpush1.msra.mxu0 0.0
    %1071 = vmatprep.subr.mxu0 0.0
    %1072 = vmatpush1.msra.mxu0 0.0
    %1073 = vmatprep.subr.mxu0 0.0
    %1074 = vmatpush1.msra.mxu0 0.0
    %1075 = vmatprep.subr.mxu0 0.0
    %1076 = vmatpush1.msra.mxu0 0.0
    %1077 = vmatprep.subr.mxu0 0.0
    %1078 = vmatpush1.msra.mxu0 0.0
    %1079 = vmatprep.mubr.f32.mxu0 0.0
    %1080 = vmatmul.mubr.f32.gmra.mrb[0].mxu0 %v1013
    %v1081 = vpop.f32.mrb[0].mxu0
    %v1082 = vadd.f32 0.0, %v1081
    %v1083 = vpop.f32.mrb[0].mxu0
    %1084 = vdwg.mxu0
    %v1085 = vlaneseq
    %v1086 = vshrl.u32 %v1085, 7
    %v1087 = vsub.s32 0, %v1086
    %v1088 = vrot.slane %v1082, %v1087
    %v1089 = vmul.f32 %v928, %v1088
    %v1090 = vmul.f32 %v929, %v1088
    %vm1091 = vcmp.ge.f32.partialorder %v1089, 0.0
    %vm1092 = vcmp.ge.f32.partialorder %v1090, 0.0
    %v1093 = vmul.f32 %v1089, 0.01
    %v1094 = vmul.f32 %v1090, 0.01
    %v1095 = vsel %vm1091, %v1089, %v1093
    %v1096 = vsel %vm1092, %v1090, %v1094
    %v1097 = vpack.c.bf16 %v1096, %v1095
    %v1099 = vunpack.c.l.b16 %v1097
    %v1100 = vunpack.c.h.b16 %v1097
    %v1101 = vpack.c.b16 %v1099, %v1099
    %v1102 = vpack.c.b16 %v1100, %v1100
    %1105 = vst [vmem:[#allocation7] sm:$0xf] %v1101
    %1106 = vst [vmem:[#allocation7 + $0x4] sm:$0xf] %v1102
    %v1107 = vadd.f32 %v501, %v502
    %v1108 = vrot.slane %v1107, 4
    %v1109 = vadd.f32 %v1107, %v1108
    %v1110 = vrot.slane %v1109, 2
    %v1111 = vadd.f32 %v1109, %v1110
    %v1112 = vrot.slane %v1111, 1
    %v1113 = vadd.f32 %v1111, %v1112
    %1114 = vmatprep.subr.mxu0 0.0
    %1115 = vmatpush1.msra.mxu0 %v741
    %1116 = vmatprep.subr.mxu0 0.0
    %1117 = vmatpush1.msra.mxu0 %v742
    %1118 = vmatprep.subr.mxu0 0.0
    %1119 = vmatpush1.msra.mxu0 %v743
    %1120 = vmatprep.subr.mxu0 0.0
    %1121 = vmatpush1.msra.mxu0 %v744
    %1122 = vmatprep.subr.mxu0 0.0
    %1123 = vmatpush1.msra.mxu0 %v745
    %1124 = vmatprep.subr.mxu0 0.0
    %1125 = vmatpush1.msra.mxu0 %v746
    %1126 = vmatprep.subr.mxu0 0.0
    %1127 = vmatpush1.msra.mxu0 %v747
    %1128 = vmatprep.subr.mxu0 0.0
    %1129 = vmatpush1.msra.mxu0 %v748
    %1130 = vmatprep.subr.mxu0 0.0
    %1131 = vmatpush1.msra.mxu0 %v749
    %1132 = vmatprep.subr.mxu0 0.0
    %1133 = vmatpush1.msra.mxu0 %v750
    %1134 = vmatprep.subr.mxu0 0.0
    %1135 = vmatpush1.msra.mxu0 %v751
    %1136 = vmatprep.subr.mxu0 0.0
    %1137 = vmatpush1.msra.mxu0 %v752
    %1138 = vmatprep.subr.mxu0 0.0
    %1139 = vmatpush1.msra.mxu0 %v753
    %1140 = vmatprep.subr.mxu0 0.0
    %1141 = vmatpush1.msra.mxu0 %v754
    %1142 = vmatprep.subr.mxu0 0.0
    %1143 = vmatpush1.msra.mxu0 %v755
    %1144 = vmatprep.subr.mxu0 0.0
    %1145 = vmatpush1.msra.mxu0 %v756
    %1146 = vmatprep.subr.mxu0 0.0
    %1147 = vmatpush1.msra.mxu0 0.0
    %1148 = vmatprep.subr.mxu0 0.0
    %1149 = vmatpush1.msra.mxu0 0.0
    %1150 = vmatprep.subr.mxu0 0.0
    %1151 = vmatpush1.msra.mxu0 0.0
    %1152 = vmatprep.subr.mxu0 0.0
    %1153 = vmatpush1.msra.mxu0 0.0
    %1154 = vmatprep.subr.mxu0 0.0
    %1155 = vmatpush1.msra.mxu0 0.0
    %1156 = vmatprep.subr.mxu0 0.0
    %1157 = vmatpush1.msra.mxu0 0.0
    %1158 = vmatprep.subr.mxu0 0.0
    %1159 = vmatpush1.msra.mxu0 0.0
    %1160 = vmatprep.subr.mxu0 0.0
    %1161 = vmatpush1.msra.mxu0 0.0
    %1162 = vmatprep.subr.mxu0 0.0
    %1163 = vmatpush1.msra.mxu0 0.0
    %1164 = vmatprep.subr.mxu0 0.0
    %1165 = vmatpush1.msra.mxu0 0.0
    %1166 = vmatprep.subr.mxu0 0.0
    %1167 = vmatpush1.msra.mxu0 0.0
    %1168 = vmatprep.subr.mxu0 0.0
    %1169 = vmatpush1.msra.mxu0 0.0
    %1170 = vmatprep.subr.mxu0 0.0
    %1171 = vmatpush1.msra.mxu0 0.0
    %1172 = vmatprep.subr.mxu0 0.0
    %1173 = vmatpush1.msra.mxu0 0.0
    %1174 = vmatprep.subr.mxu0 0.0
    %1175 = vmatpush1.msra.mxu0 0.0
    %1176 = vmatprep.subr.mxu0 0.0
    %1177 = vmatpush1.msra.mxu0 0.0
    %1178 = vmatprep.mubr.f32.mxu0 0.0
    %1179 = vmatmul.mubr.f32.gmra.mrb[0].mxu0 %v1113
    %v1180 = vpop.f32.mrb[0].mxu0
    %v1181 = vadd.f32 0.0, %v1180
    %v1182 = vpop.f32.mrb[0].mxu0
    %1183 = vdwg.mxu0
    %v1184 = vmul.f32 %v1181, 0.00390625
    %v1186 = vsel %vm850, %v1184, 0
    %1188 = vmatprep.subr.mxu0 0.0
    %1189 = vmatpush1.msra.mxu0 %v771
    %1190 = vmatprep.subr.mxu0 0.0
    %1191 = vmatpush1.msra.mxu0 0.0
    %1192 = vmatprep.subr.mxu0 0.0
    %1193 = vmatpush1.msra.mxu0 0.0
    %1194 = vmatprep.subr.mxu0 0.0
    %1195 = vmatpush1.msra.mxu0 0.0
    %1196 = vmatprep.subr.mxu0 0.0
    %1197 = vmatpush1.msra.mxu0 0.0
    %1198 = vmatprep.subr.mxu0 0.0
    %1199 = vmatpush1.msra.mxu0 0.0
    %1200 = vmatprep.subr.mxu0 0.0
    %1201 = vmatpush1.msra.mxu0 0.0
    %1202 = vmatprep.subr.mxu0 0.0
    %1203 = vmatpush1.msra.mxu0 0.0
    %1204 = vmatprep.subr.mxu0 0.0
    %1205 = vmatpush1.msra.mxu0 0.0
    %1206 = vmatprep.subr.mxu0 0.0
    %1207 = vmatpush1.msra.mxu0 0.0
    %1208 = vmatprep.subr.mxu0 0.0
    %1209 = vmatpush1.msra.mxu0 0.0
    %1210 = vmatprep.subr.mxu0 0.0
    %1211 = vmatpush1.msra.mxu0 0.0
    %1212 = vmatprep.subr.mxu0 0.0
    %1213 = vmatpush1.msra.mxu0 0.0
    %1214 = vmatprep.subr.mxu0 0.0
    %1215 = vmatpush1.msra.mxu0 0.0
    %1216 = vmatprep.subr.mxu0 0.0
    %1217 = vmatpush1.msra.mxu0 0.0
    %1218 = vmatprep.subr.mxu0 0.0
    %1219 = vmatpush1.msra.mxu0 0.0
    %1220 = vmatprep.subr.mxu0 0.0
    %1221 = vmatpush1.msra.mxu0 0.0
    %1222 = vmatprep.subr.mxu0 0.0
    %1223 = vmatpush1.msra.mxu0 0.0
    %1224 = vmatprep.subr.mxu0 0.0
    %1225 = vmatpush1.msra.mxu0 0.0
    %1226 = vmatprep.subr.mxu0 0.0
    %1227 = vmatpush1.msra.mxu0 0.0
    %1228 = vmatprep.subr.mxu0 0.0
    %1229 = vmatpush1.msra.mxu0 0.0
    %1230 = vmatprep.subr.mxu0 0.0
    %1231 = vmatpush1.msra.mxu0 0.0
    %1232 = vmatprep.subr.mxu0 0.0
    %1233 = vmatpush1.msra.mxu0 0.0
    %1234 = vmatprep.subr.mxu0 0.0
    %1235 = vmatpush1.msra.mxu0 0.0
    %1236 = vmatprep.subr.mxu0 0.0
    %1237 = vmatpush1.msra.mxu0 0.0
    %1238 = vmatprep.subr.mxu0 0.0
    %1239 = vmatpush1.msra.mxu0 0.0
    %1240 = vmatprep.subr.mxu0 0.0
    %1241 = vmatpush1.msra.mxu0 0.0
    %1242 = vmatprep.subr.mxu0 0.0
    %1243 = vmatpush1.msra.mxu0 0.0
    %1244 = vmatprep.subr.mxu0 0.0
    %1245 = vmatpush1.msra.mxu0 0.0
    %1246 = vmatprep.subr.mxu0 0.0
    %1247 = vmatpush1.msra.mxu0 0.0
    %1248 = vmatprep.subr.mxu0 0.0
    %1249 = vmatpush1.msra.mxu0 0.0
    %1250 = vmatprep.subr.mxu0 0.0
    %1251 = vmatpush1.msra.mxu0 0.0
    %1252 = vmatprep.mubr.f32.mxu0 0.0
    %1253 = vmatmul.mubr.f32.gmra.mrb[0].mxu0 %v1186
    %v1254 = vpop.f32.mrb[0].mxu0
    %v1255 = vadd.f32 0.0, %v1254
    %v1256 = vpop.f32.mrb[0].mxu0
    %1257 = vdwg.mxu0
    %v1258 = vlaneseq
    %v1259 = vshrl.u32 %v1258, 7
    %v1260 = vsub.s32 0, %v1259
    %v1261 = vrot.slane %v1255, %v1260
    %v1262 = vsub.f32 %v501, %v1261
    %v1263 = vsub.f32 %v502, %v1261
    %v1264 = vmul.f32 %v1262, %v1262
    %v1265 = vmul.f32 %v1263, %v1263
    %v1266 = vadd.f32 %v1264, %v1265
    %v1267 = vrot.slane %v1266, 4
    %v1268 = vadd.f32 %v1266, %v1267
    %v1269 = vrot.slane %v1268, 2
    %v1270 = vadd.f32 %v1268, %v1269
    %v1271 = vrot.slane %v1270, 1
    %v1272 = vadd.f32 %v1270, %v1271
    %1273 = vmatprep.subr.mxu0 0.0
    %1274 = vmatpush1.msra.mxu0 %v741
    %1275 = vmatprep.subr.mxu0 0.0
    %1276 = vmatpush1.msra.mxu0 %v742
    %1277 = vmatprep.subr.mxu0 0.0
    %1278 = vmatpush1.msra.mxu0 %v743
    %1279 = vmatprep.subr.mxu0 0.0
    %1280 = vmatpush1.msra.mxu0 %v744
    %1281 = vmatprep.subr.mxu0 0.0
    %1282 = vmatpush1.msra.mxu0 %v745
    %1283 = vmatprep.subr.mxu0 0.0
    %1284 = vmatpush1.msra.mxu0 %v746
    %1285 = vmatprep.subr.mxu0 0.0
    %1286 = vmatpush1.msra.mxu0 %v747
    %1287 = vmatprep.subr.mxu0 0.0
    %1288 = vmatpush1.msra.mxu0 %v748
    %1289 = vmatprep.subr.mxu0 0.0
    %1290 = vmatpush1.msra.mxu0 %v749
    %1291 = vmatprep.subr.mxu0 0.0
    %1292 = vmatpush1.msra.mxu0 %v750
    %1293 = vmatprep.subr.mxu0 0.0
    %1294 = vmatpush1.msra.mxu0 %v751
    %1295 = vmatprep.subr.mxu0 0.0
    %1296 = vmatpush1.msra.mxu0 %v752
    %1297 = vmatprep.subr.mxu0 0.0
    %1298 = vmatpush1.msra.mxu0 %v753
    %1299 = vmatprep.subr.mxu0 0.0
    %1300 = vmatpush1.msra.mxu0 %v754
    %1301 = vmatprep.subr.mxu0 0.0
    %1302 = vmatpush1.msra.mxu0 %v755
    %1303 = vmatprep.subr.mxu0 0.0
    %1304 = vmatpush1.msra.mxu0 %v756
    %1305 = vmatprep.subr.mxu0 0.0
    %1306 = vmatpush1.msra.mxu0 0.0
    %1307 = vmatprep.subr.mxu0 0.0
    %1308 = vmatpush1.msra.mxu0 0.0
    %1309 = vmatprep.subr.mxu0 0.0
    %1310 = vmatpush1.msra.mxu0 0.0
    %1311 = vmatprep.subr.mxu0 0.0
    %1312 = vmatpush1.msra.mxu0 0.0
    %1313 = vmatprep.subr.mxu0 0.0
    %1314 = vmatpush1.msra.mxu0 0.0
    %1315 = vmatprep.subr.mxu0 0.0
    %1316 = vmatpush1.msra.mxu0 0.0
    %1317 = vmatprep.subr.mxu0 0.0
    %1318 = vmatpush1.msra.mxu0 0.0
    %1319 = vmatprep.subr.mxu0 0.0
    %1320 = vmatpush1.msra.mxu0 0.0
    %1321 = vmatprep.subr.mxu0 0.0
    %1322 = vmatpush1.msra.mxu0 0.0
    %1323 = vmatprep.subr.mxu0 0.0
    %1324 = vmatpush1.msra.mxu0 0.0
    %1325 = vmatprep.subr.mxu0 0.0
    %1326 = vmatpush1.msra.mxu0 0.0
    %1327 = vmatprep.subr.mxu0 0.0
    %1328 = vmatpush1.msra.mxu0 0.0
    %1329 = vmatprep.subr.mxu0 0.0
    %1330 = vmatpush1.msra.mxu0 0.0
    %1331 = vmatprep.subr.mxu0 0.0
    %1332 = vmatpush1.msra.mxu0 0.0
    %1333 = vmatprep.subr.mxu0 0.0
    %1334 = vmatpush1.msra.mxu0 0.0
    %1335 = vmatprep.subr.mxu0 0.0
    %1336 = vmatpush1.msra.mxu0 0.0
    %1337 = vmatprep.mubr.f32.mxu0 0.0
    %1338 = vmatmul.mubr.f32.gmra.mrb[0].mxu0 %v1272
    %v1339 = vpop.f32.mrb[0].mxu0
    %v1340 = vadd.f32 0.0, %v1339
    %v1341 = vpop.f32.mrb[0].mxu0
    %1342 = vdwg.mxu0
    %v1343 = vmul.f32 %v1340, 0.00390625
    %v1344 = vadd.f32 %v1343, 1e-05
    %v1345 = vrsqrt.pop %v1344
    %v1347 = vsel %vm850, %v1345, 0
    %1349 = vmatprep.subr.mxu0 0.0
    %1350 = vmatpush1.msra.mxu0 %v771
    %1351 = vmatprep.subr.mxu0 0.0
    %1352 = vmatpush1.msra.mxu0 0.0
    %1353 = vmatprep.subr.mxu0 0.0
    %1354 = vmatpush1.msra.mxu0 0.0
    %1355 = vmatprep.subr.mxu0 0.0
    %1356 = vmatpush1.msra.mxu0 0.0
    %1357 = vmatprep.subr.mxu0 0.0
    %1358 = vmatpush1.msra.mxu0 0.0
    %1359 = vmatprep.subr.mxu0 0.0
    %1360 = vmatpush1.msra.mxu0 0.0
    %1361 = vmatprep.subr.mxu0 0.0
    %1362 = vmatpush1.msra.mxu0 0.0
    %1363 = vmatprep.subr.mxu0 0.0
    %1364 = vmatpush1.msra.mxu0 0.0
    %1365 = vmatprep.subr.mxu0 0.0
    %1366 = vmatpush1.msra.mxu0 0.0
    %1367 = vmatprep.subr.mxu0 0.0
    %1368 = vmatpush1.msra.mxu0 0.0
    %1369 = vmatprep.subr.mxu0 0.0
    %1370 = vmatpush1.msra.mxu0 0.0
    %1371 = vmatprep.subr.mxu0 0.0
    %1372 = vmatpush1.msra.mxu0 0.0
    %1373 = vmatprep.subr.mxu0 0.0
    %1374 = vmatpush1.msra.mxu0 0.0
    %1375 = vmatprep.subr.mxu0 0.0
    %1376 = vmatpush1.msra.mxu0 0.0
    %1377 = vmatprep.subr.mxu0 0.0
    %1378 = vmatpush1.msra.mxu0 0.0
    %1379 = vmatprep.subr.mxu0 0.0
    %1380 = vmatpush1.msra.mxu0 0.0
    %1381 = vmatprep.subr.mxu0 0.0
    %1382 = vmatpush1.msra.mxu0 0.0
    %1383 = vmatprep.subr.mxu0 0.0
    %1384 = vmatpush1.msra.mxu0 0.0
    %1385 = vmatprep.subr.mxu0 0.0
    %1386 = vmatpush1.msra.mxu0 0.0
    %1387 = vmatprep.subr.mxu0 0.0
    %1388 = vmatpush1.msra.mxu0 0.0
    %1389 = vmatprep.subr.mxu0 0.0
    %1390 = vmatpush1.msra.mxu0 0.0
    %1391 = vmatprep.subr.mxu0 0.0
    %1392 = vmatpush1.msra.mxu0 0.0
    %1393 = vmatprep.subr.mxu0 0.0
    %1394 = vmatpush1.msra.mxu0 0.0
    %1395 = vmatprep.subr.mxu0 0.0
    %1396 = vmatpush1.msra.mxu0 0.0
    %1397 = vmatprep.subr.mxu0 0.0
    %1398 = vmatpush1.msra.mxu0 0.0
    %1399 = vmatprep.subr.mxu0 0.0
    %1400 = vmatpush1.msra.mxu0 0.0
    %1401 = vmatprep.subr.mxu0 0.0
    %1402 = vmatpush1.msra.mxu0 0.0
    %1403 = vmatprep.subr.mxu0 0.0
    %1404 = vmatpush1.msra.mxu0 0.0
    %1405 = vmatprep.subr.mxu0 0.0
    %1406 = vmatpush1.msra.mxu0 0.0
    %1407 = vmatprep.subr.mxu0 0.0
    %1408 = vmatpush1.msra.mxu0 0.0
    %1409 = vmatprep.subr.mxu0 0.0
    %1410 = vmatpush1.msra.mxu0 0.0
    %1411 = vmatprep.subr.mxu0 0.0
    %1412 = vmatpush1.msra.mxu0 0.0
    %1413 = vmatprep.mubr.f32.mxu0 0.0
    %1414 = vmatmul.mubr.f32.gmra.mrb[0].mxu0 %v1347
    %v1415 = vpop.f32.mrb[0].mxu0
    %v1416 = vadd.f32 0.0, %v1415
    %v1417 = vpop.f32.mrb[0].mxu0
    %1418 = vdwg.mxu0
    %v1419 = vlaneseq
    %v1420 = vshrl.u32 %v1419, 7
    %v1421 = vsub.s32 0, %v1420
    %v1422 = vrot.slane %v1416, %v1421
    %v1423 = vmul.f32 %v1262, %v1422
    %v1424 = vmul.f32 %v1263, %v1422
    %vm1425 = vcmp.ge.f32.partialorder %v1423, 0.0
    %vm1426 = vcmp.ge.f32.partialorder %v1424, 0.0
    %v1427 = vmul.f32 %v1423, 0.01
    %v1428 = vmul.f32 %v1424, 0.01
    %v1429 = vsel %vm1425, %v1423, %v1427
    %v1430 = vsel %vm1426, %v1424, %v1428
    %v1431 = vpack.c.bf16 %v1430, %v1429
    %v1433 = vunpack.c.l.b16 %v1431
    %v1434 = vunpack.c.h.b16 %v1431
    %v1435 = vpack.c.b16 %v1433, %v1433
    %v1436 = vpack.c.b16 %v1434, %v1434
    %1439 = vst [vmem:[#allocation7 + $0x8] sm:$0xf] %v1435
    %1440 = vst [vmem:[#allocation7 + $0xc] sm:$0xf] %v1436
    // Predicated region
    $region22: #{conv_block_folded.1} parent=1 // pred_check
      _
    $region23: #{conv_block_folded.1} parent=1 // pred_check_branch
      %1442 = sbr.rel (0) target = $region25
    $region24: #{conv_block_folded.1} parent=1 // pred_region
      %s1444 = ssub.s32 256, 256
      %1445 = vsyncadd [#allocation4], %s1444
      %s1446 = sshll.u32 [#allocation7], 4
      %s1447 = int_to_ptr.vmem [resolvable:$true] %s1446
      %1452 = dma.vmem_to_hbm [thread:$0]  %s1447, 256, %s3, [#allocation4], 64, 64, 4
    $region25: #{conv_block_folded.1} parent=1 // pred_fallthru
      _
    // Predicated region
    $region26: #{conv_block_folded.1} parent=1 // pred_check
      _
    $region27: #{conv_block_folded.1} parent=1 // pred_check_branch
      %1454 = sbr.rel (0) target = $region29
    $region28: #{conv_block_folded.1} parent=1 // pred_region
      %1455 = dma.done [#allocation4], 256
    $region29: #{conv_block_folded.1} parent=1 // pred_fallthru
      _
    %1456 = vsyncpa [#allocation3], 1
    %1457 = vsyncpa [#allocation6], 1
    %1458 = vsyncpa [#allocation4], 1

</llo_original>
